<compile_context>
chip_gen: v7x
topology: tpu7x:2x2x1
jax: 0.10.0
libtpu: 0.0.40
codegen_flags: <defaults>
</compile_context>

<pallas_src>
import functools
import math

import jax
import jax.numpy as jnp
from jax.experimental import pallas as pl
from jax.experimental.pallas import tpu as pltpu

EPS = 1e-5  # nn.LayerNorm default


def _layer_norm(x, gamma, beta):
    # x: (S, D) f32, gamma/beta: (1, D) f32 — statistics kept in f32.
    mu = jnp.mean(x, axis=-1, keepdims=True)
    var = jnp.mean((x - mu) ** 2, axis=-1, keepdims=True)
    return (x - mu) * jax.lax.rsqrt(var + EPS) * gamma + beta


def _gelu_tanh(x):
    # tanh-approximate GELU: one EUP tanh + a few VPU ops; ~1e-3 max deviation
    # from PyTorch's exact (erf) nn.GELU().
    c = math.sqrt(2.0 / math.pi)
    return 0.5 * x * (1.0 + jnp.tanh(c * (x + 0.044715 * x * x * x)))


# ----------------------- fused encoder-block kernel -------------------------
def encoder_block_kernel(x_ref, ln1_g_ref, ln1_b_ref, wqkv_ref, bqkv_ref,
                         wo_ref, bo_ref, ln2_g_ref, ln2_b_ref,
                         w1_ref, b1_ref, w2_ref, b2_ref,
                         o_ref, *, num_heads):
    x = x_ref[0]                       # (S, D) f32 for this batch element
    S, D = x.shape
    hd = D // num_heads

    # ---- MSA: LN1 -> fused bf16 QKV projection -> attention -> out_proj -> +x
    xn = _layer_norm(x, ln1_g_ref[...], ln1_b_ref[...]).astype(jnp.bfloat16)

    # Single (S,D)x(D,3D) bf16 matmul; 1/sqrt(hd) already folded into the Q
    # columns of wqkv/bqkv on the host.  f32 accumulation + f32 bias.
    qkv = jnp.dot(xn, wqkv_ref[...], preferred_element_type=jnp.float32) + bqkv_ref[...]
    q = qkv[:, 0 * D:1 * D].astype(jnp.bfloat16)
    k = qkv[:, 1 * D:2 * D].astype(jnp.bfloat16)
    v = qkv[:, 2 * D:3 * D].astype(jnp.bfloat16)

    # Per-head attention with per-head out-projection accumulation: every store
    # is a full-width (S, D) slab; wo row slices are sublane-aligned.
    y_attn = jnp.zeros((S, D), jnp.float32)
    for h in range(num_heads):
        lo = h * hd
        qh = q[:, lo:lo + hd]
        kh = k[:, lo:lo + hd]
        vh = v[:, lo:lo + hd]
        # q @ k^T without an explicit transpose: contract dim 1 with dim 1.
        s = jax.lax.dot_general(qh, kh, (((1,), (1,)), ((), ())),
                                preferred_element_type=jnp.float32)   # (S, S) f32
        s = s - jnp.max(s, axis=-1, keepdims=True)
        p = jnp.exp(s)
        p = p * pl.reciprocal(jnp.sum(p, axis=-1, keepdims=True), approx=True)
        oh = jnp.dot(p.astype(jnp.bfloat16), vh,
                     preferred_element_type=jnp.float32)              # (S, hd) f32
        y_attn = y_attn + jnp.dot(oh.astype(jnp.bfloat16), wo_ref[lo:lo + hd, :],
                                  preferred_element_type=jnp.float32)

    y1 = y_attn + bo_ref[...] + x      # residual around the MSA block (f32)

    # ---- MLP: LN2 -> Linear -> GELU -> Linear -> +y1 (dropout: identity) ----
    yn = _layer_norm(y1, ln2_g_ref[...], ln2_b_ref[...]).astype(jnp.bfloat16)
    hmid = jnp.dot(yn, w1_ref[...], preferred_element_type=jnp.float32) + b1_ref[...]
    hmid = _gelu_tanh(hmid).astype(jnp.bfloat16)
    y2 = (jnp.dot(hmid, w2_ref[...], preferred_element_type=jnp.float32)
          + b2_ref[...] + y1)          # residual around the MLP block (f32)

    o_ref[0] = y2.astype(o_ref.dtype)


# -------------------------------- wrapper ------------------------------------
def transformer_encoder_block(x, params, *, num_heads):
    B, S, D = x.shape
    hd = D // num_heads
    scale = 1.0 / math.sqrt(hd)

    # Host-side weight prep (one-time):
    #  * pre-transpose so the kernel does plain xn @ Wt (no in-kernel transposes)
    #  * fuse Q/K/V into one (D, 3D) weight, fold the attention scale into Q
    #  * cast all matmul weights to bf16 (biases / LN params stay f32)
    wqkv_t = jnp.concatenate(
        [params["wq"] * scale, params["wk"], params["wv"]], axis=0
    ).T.astype(jnp.bfloat16)                                                  # (D, 3D) bf16
    bqkv = jnp.concatenate(
        [params["bq"] * scale, params["bk"], params["bv"]], axis=1)           # (1, 3D) f32
    wo_t = params["wo"].T.astype(jnp.bfloat16)                                # (D, D)  bf16
    w1_t = params["w1"].T.astype(jnp.bfloat16)                                # (D, M)  bf16
    w2_t = params["w2"].T.astype(jnp.bfloat16)                                # (M, D)  bf16

    act_spec = pl.BlockSpec((1, S, D), lambda b: (b, 0, 0))

    def w_spec(w):
        # full-array block, constant index -> fetched once, resident across grid steps
        return pl.BlockSpec(w.shape, lambda b: (0, 0))

    weights = (params["ln1_g"], params["ln1_b"], wqkv_t, bqkv,
               wo_t, params["bo"], params["ln2_g"], params["ln2_b"],
               w1_t, params["b1"], w2_t, params["b2"])

    out = pl.pallas_call(
        functools.partial(encoder_block_kernel, num_heads=num_heads),
        out_shape=jax.ShapeDtypeStruct((B, S, D), x.dtype),
        grid=(B,),
        in_specs=[act_spec] + [w_spec(w) for w in weights],
        out_specs=act_spec,
        compiler_params=pltpu.CompilerParams(
            dimension_semantics=("parallel",),
            # Enough for bf16 ViT-Base weights (~14 MB) + pipeline buffers +
            # activations; within physical VMEM on v5e/v6e (128 MiB) and v7x (64 MiB).
            vmem_limit_bytes=48 * 1024 * 1024,
        ),
    )(x, *weights)
    return out


# --------------------------- pure-JAX reference ------------------------------
def reference(x, p, *, num_heads):
    # f32 throughout, exact softmax, exact (erf) GELU — matches the PyTorch module.
    def ln(v, g, b):
        mu = jnp.mean(v, -1, keepdims=True)
        var = jnp.mean((v - mu) ** 2, -1, keepdims=True)
        return (v - mu) * jax.lax.rsqrt(var + EPS) * g + b

    B, S, D = x.shape
    hd = D // num_heads
    xn = ln(x, p["ln1_g"], p["ln1_b"])
    q = xn @ p["wq"].T + p["bq"]
    k = xn @ p["wk"].T + p["bk"]
    v = xn @ p["wv"].T + p["bv"]

    def split(t):  # (B,S,D) -> (B,H,S,hd)
        return t.reshape(B, S, num_heads, hd).transpose(0, 2, 1, 3)

    qh, kh, vh = split(q), split(k), split(v)
    s = jnp.einsum("bhqd,bhkd->bhqk", qh, kh) / math.sqrt(hd)
    pattn = jax.nn.softmax(s, axis=-1)
    o = jnp.einsum("bhqk,bhkd->bhqd", pattn, vh).transpose(0, 2, 1, 3).reshape(B, S, D)
    y1 = (o @ p["wo"].T + p["bo"]) + x

    yn = ln(y1, p["ln2_g"], p["ln2_b"])
    h = yn @ p["w1"].T + p["b1"]
    h = 0.5 * h * (1.0 + jax.lax.erf(h / math.sqrt(2.0)))
    y2 = (h @ p["w2"].T + p["b2"]) + y1
    return y2


# ----------------------------------- main -------------------------------------
if __name__ == "__main__":
    # Small shapes consistent with the module's forward:
    B, S, D, H, M = 2, 8, 32, 4, 64   # batch, seq, embed_dim, num_heads, mlp_size

    key = jax.random.PRNGKey(0)
    ks = jax.random.split(key, 10)

    params = {
        # LayerNorm params (kept 2D (1, D) for clean broadcasting in-kernel)
        "ln1_g": jnp.ones((1, D), jnp.float32),
        "ln1_b": jnp.zeros((1, D), jnp.float32),
        "ln2_g": jnp.ones((1, D), jnp.float32),
        "ln2_b": jnp.zeros((1, D), jnp.float32),
        # MultiheadAttention in_proj (split q/k/v) and out_proj
        "wq": 0.05 * jax.random.normal(ks[0], (D, D), jnp.float32),
        "wk": 0.05 * jax.random.normal(ks[1], (D, D), jnp.float32),
        "wv": 0.05 * jax.random.normal(ks[2], (D, D), jnp.float32),
        "bq": 0.01 * jax.random.normal(ks[3], (1, D), jnp.float32),
        "bk": 0.01 * jax.random.normal(ks[4], (1, D), jnp.float32),
        "bv": 0.01 * jax.random.normal(ks[5], (1, D), jnp.float32),
        "wo": 0.05 * jax.random.normal(ks[6], (D, D), jnp.float32),
        "bo": jnp.zeros((1, D), jnp.float32),
        # MLP linears
        "w1": 0.05 * jax.random.normal(ks[7], (M, D), jnp.float32),
        "b1": 0.01 * jax.random.normal(ks[8], (1, M), jnp.float32),
        "w2": 0.05 * jax.random.normal(ks[9], (D, M), jnp.float32),
        "b2": jnp.zeros((1, D), jnp.float32),
    }

    x = jax.random.normal(jax.random.PRNGKey(42), (B, S, D), jnp.float32)

    out = transformer_encoder_block(x, params, num_heads=H)
    out = jax.block_until_ready(out)

    ref = reference(x, params, num_heads=H)
    assert out.shape == (B, S, D)
    # 3e-2 tolerance: bf16 matmul operands, EUP approximate reciprocal in the
    # softmax denominator, and tanh-GELU vs exact erf-GELU.  LN / softmax stats,
    # accumulation, biases and residuals are f32.
    err = float(jnp.max(jnp.abs(out - ref)))
    assert err < 3e-2, f"mismatch vs pure-JAX reference: max abs err = {err}"

    print("KERNEL_OK")
</pallas_src>

<mosaic_0001>
module attributes {stable_mosaic.version = 11 : i64} {
  func.func @encoder_block_kernel(%arg0: i32, %arg1: memref<1x8x32xf32, #tpu.memory_space<vmem>>, %arg2: memref<1x32xf32, #tpu.memory_space<vmem>>, %arg3: memref<1x32xf32, #tpu.memory_space<vmem>>, %arg4: memref<32x96xbf16, #tpu.memory_space<vmem>>, %arg5: memref<1x96xf32, #tpu.memory_space<vmem>>, %arg6: memref<32x32xbf16, #tpu.memory_space<vmem>>, %arg7: memref<1x32xf32, #tpu.memory_space<vmem>>, %arg8: memref<1x32xf32, #tpu.memory_space<vmem>>, %arg9: memref<1x32xf32, #tpu.memory_space<vmem>>, %arg10: memref<32x64xbf16, #tpu.memory_space<vmem>>, %arg11: memref<1x64xf32, #tpu.memory_space<vmem>>, %arg12: memref<64x32xbf16, #tpu.memory_space<vmem>>, %arg13: memref<1x32xf32, #tpu.memory_space<vmem>>, %arg14: memref<1x8x32xf32, #tpu.memory_space<vmem>>) attributes {dimension_semantics = [#tpu.dimension_semantics<parallel>], iteration_bounds = array<i64: 2>, scalar_prefetch = 0 : i64, scratch_operands = 0 : i64, tpu.core_type = #tpu.core_type<tc>, window_params = [{transform_indices = @transform_0, window_bounds = array<i64: 1, 8, 32>}, {pipeline_mode = #tpu.pipeline_mode<synchronous>, transform_indices = @transform_1, window_bounds = array<i64: 1, 32>}, {pipeline_mode = #tpu.pipeline_mode<synchronous>, transform_indices = @transform_2, window_bounds = array<i64: 1, 32>}, {pipeline_mode = #tpu.pipeline_mode<synchronous>, transform_indices = @transform_3, window_bounds = array<i64: 32, 96>}, {pipeline_mode = #tpu.pipeline_mode<synchronous>, transform_indices = @transform_4, window_bounds = array<i64: 1, 96>}, {pipeline_mode = #tpu.pipeline_mode<synchronous>, transform_indices = @transform_5, window_bounds = array<i64: 32, 32>}, {pipeline_mode = #tpu.pipeline_mode<synchronous>, transform_indices = @transform_6, window_bounds = array<i64: 1, 32>}, {pipeline_mode = #tpu.pipeline_mode<synchronous>, transform_indices = @transform_7, window_bounds = array<i64: 1, 32>}, {pipeline_mode = #tpu.pipeline_mode<synchronous>, transform_indices = @transform_8, window_bounds = array<i64: 1, 32>}, {pipeline_mode = #tpu.pipeline_mode<synchronous>, transform_indices = @transform_9, window_bounds = array<i64: 32, 64>}, {pipeline_mode = #tpu.pipeline_mode<synchronous>, transform_indices = @transform_10, window_bounds = array<i64: 1, 64>}, {pipeline_mode = #tpu.pipeline_mode<synchronous>, transform_indices = @transform_11, window_bounds = array<i64: 64, 32>}, {pipeline_mode = #tpu.pipeline_mode<synchronous>, transform_indices = @transform_12, window_bounds = array<i64: 1, 32>}, {transform_indices = @transform_13, window_bounds = array<i64: 1, 8, 32>}]} {
    %c0 = arith.constant 0 : index
    %c0_0 = arith.constant 0 : index
    %c0_1 = arith.constant 0 : index
    %0 = vector.load %arg1[%c0, %c0_0, %c0_1] : memref<1x8x32xf32, #tpu.memory_space<vmem>>, vector<1x8x32xf32>
    %1 = vector.shape_cast %0 : vector<1x8x32xf32> to vector<8x32xf32>
    %c0_2 = arith.constant 0 : index
    %c0_3 = arith.constant 0 : index
    %2 = vector.load %arg2[%c0_2, %c0_3] : memref<1x32xf32, #tpu.memory_space<vmem>>, vector<1x32xf32>
    %c0_4 = arith.constant 0 : index
    %c0_5 = arith.constant 0 : index
    %3 = vector.load %arg3[%c0_4, %c0_5] : memref<1x32xf32, #tpu.memory_space<vmem>>, vector<1x32xf32>
    %cst = arith.constant dense<0.000000e+00> : vector<8xf32>
    %4 = vector.multi_reduction <add>, %1, %cst [1] : vector<8x32xf32> to vector<8xf32>
    %5 = vector.shape_cast %4 : vector<8xf32> to vector<8x1xf32>
    %cst_6 = arith.constant 3.200000e+01 : f32
    %6 = vector.broadcast %cst_6 : f32 to vector<8x1xf32>
    %7 = arith.divf %5, %6 : vector<8x1xf32>
    %8 = vector.broadcast %7 : vector<8x1xf32> to vector<8x32xf32>
    %9 = arith.subf %1, %8 : vector<8x32xf32>
    %10 = arith.mulf %9, %9 : vector<8x32xf32>
    %cst_7 = arith.constant dense<0.000000e+00> : vector<8xf32>
    %11 = vector.multi_reduction <add>, %10, %cst_7 [1] : vector<8x32xf32> to vector<8xf32>
    %12 = vector.shape_cast %11 : vector<8xf32> to vector<8x1xf32>
    %cst_8 = arith.constant 3.200000e+01 : f32
    %13 = vector.broadcast %cst_8 : f32 to vector<8x1xf32>
    %14 = arith.divf %12, %13 : vector<8x1xf32>
    %15 = vector.broadcast %7 : vector<8x1xf32> to vector<8x32xf32>
    %16 = arith.subf %1, %15 : vector<8x32xf32>
    %cst_9 = arith.constant 9.99999974E-6 : f32
    %17 = vector.broadcast %cst_9 : f32 to vector<8x1xf32>
    %18 = arith.addf %14, %17 : vector<8x1xf32>
    %19 = math.rsqrt %18 : vector<8x1xf32>
    %20 = vector.broadcast %19 : vector<8x1xf32> to vector<8x32xf32>
    %21 = arith.mulf %16, %20 : vector<8x32xf32>
    %22 = vector.broadcast %2 : vector<1x32xf32> to vector<8x32xf32>
    %23 = arith.mulf %21, %22 : vector<8x32xf32>
    %24 = vector.broadcast %3 : vector<1x32xf32> to vector<8x32xf32>
    %25 = arith.addf %23, %24 : vector<8x32xf32>
    %26 = arith.truncf %25 : vector<8x32xf32> to vector<8x32xbf16>
    %c0_10 = arith.constant 0 : index
    %c0_11 = arith.constant 0 : index
    %27 = vector.load %arg4[%c0_10, %c0_11] : memref<32x96xbf16, #tpu.memory_space<vmem>>, vector<32x96xbf16>
    %cst_12 = arith.constant dense<0.000000e+00> : vector<8x96xf32>
    %28 = tpu.matmul %26, %27, %cst_12 {dimension_numbers = #tpu.dot_dimension_numbers<[1], [0], [0], [1], [0, 0, 1, 1], [], []>} : vector<8x32xbf16>, vector<32x96xbf16>, vector<8x96xf32> -> vector<8x96xf32>
    %c0_13 = arith.constant 0 : index
    %c0_14 = arith.constant 0 : index
    %29 = vector.load %arg5[%c0_13, %c0_14] : memref<1x96xf32, #tpu.memory_space<vmem>>, vector<1x96xf32>
    %30 = vector.broadcast %29 : vector<1x96xf32> to vector<8x96xf32>
    %31 = arith.addf %28, %30 : vector<8x96xf32>
    %32 = vector.extract_strided_slice %31 {offsets = [0, 0], sizes = [8, 32], strides = [1, 1]} : vector<8x96xf32> to vector<8x32xf32>
    %33 = arith.truncf %32 : vector<8x32xf32> to vector<8x32xbf16>
    %34 = vector.extract_strided_slice %31 {offsets = [0, 32], sizes = [8, 32], strides = [1, 1]} : vector<8x96xf32> to vector<8x32xf32>
    %35 = arith.truncf %34 : vector<8x32xf32> to vector<8x32xbf16>
    %36 = vector.extract_strided_slice %31 {offsets = [0, 64], sizes = [8, 32], strides = [1, 1]} : vector<8x96xf32> to vector<8x32xf32>
    %37 = arith.truncf %36 : vector<8x32xf32> to vector<8x32xbf16>
    %cst_15 = arith.constant 0.000000e+00 : f32
    %38 = vector.broadcast %cst_15 : f32 to vector<8x32xf32>
    %39 = vector.extract_strided_slice %33 {offsets = [0, 0], sizes = [8, 8], strides = [1, 1]} : vector<8x32xbf16> to vector<8x8xbf16>
    %40 = vector.extract_strided_slice %35 {offsets = [0, 0], sizes = [8, 8], strides = [1, 1]} : vector<8x32xbf16> to vector<8x8xbf16>
    %41 = vector.extract_strided_slice %37 {offsets = [0, 0], sizes = [8, 8], strides = [1, 1]} : vector<8x32xbf16> to vector<8x8xbf16>
    %cst_16 = arith.constant dense<0.000000e+00> : vector<8x8xf32>
    %42 = tpu.matmul %39, %40, %cst_16 {dimension_numbers = #tpu.dot_dimension_numbers<[1], [1], [0], [0], [0, 0, 1, 0], [], []>} : vector<8x8xbf16>, vector<8x8xbf16>, vector<8x8xf32> -> vector<8x8xf32>
    %cst_17 = arith.constant dense<0xFF800000> : vector<8xf32>
    %43 = vector.multi_reduction <maximumf>, %42, %cst_17 [1] : vector<8x8xf32> to vector<8xf32>
    %44 = vector.shape_cast %43 : vector<8xf32> to vector<8x1xf32>
    %45 = vector.broadcast %44 : vector<8x1xf32> to vector<8x8xf32>
    %46 = arith.subf %42, %45 : vector<8x8xf32>
    %47 = math.exp %46 : vector<8x8xf32>
    %cst_18 = arith.constant dense<0.000000e+00> : vector<8xf32>
    %48 = vector.multi_reduction <add>, %47, %cst_18 [1] : vector<8x8xf32> to vector<8xf32>
    %49 = vector.shape_cast %48 : vector<8xf32> to vector<8x1xf32>
    %50 = tpu.reciprocal %49 {approx = true} : vector<8x1xf32> -> vector<8x1xf32>
    %51 = vector.broadcast %50 : vector<8x1xf32> to vector<8x8xf32>
    %52 = arith.mulf %47, %51 : vector<8x8xf32>
    %53 = arith.truncf %52 : vector<8x8xf32> to vector<8x8xbf16>
    %cst_19 = arith.constant dense<0.000000e+00> : vector<8x8xf32>
    %54 = tpu.matmul %53, %41, %cst_19 {dimension_numbers = #tpu.dot_dimension_numbers<[1], [0], [0], [1], [0, 0, 1, 1], [], []>} : vector<8x8xbf16>, vector<8x8xbf16>, vector<8x8xf32> -> vector<8x8xf32>
    %55 = arith.truncf %54 : vector<8x8xf32> to vector<8x8xbf16>
    %c0_20 = arith.constant 0 : index
    %c0_21 = arith.constant 0 : index
    %56 = vector.load %arg6[%c0_20, %c0_21] : memref<32x32xbf16, #tpu.memory_space<vmem>>, vector<8x32xbf16>
    %cst_22 = arith.constant dense<0.000000e+00> : vector<8x32xf32>
    %57 = tpu.matmul %55, %56, %cst_22 {dimension_numbers = #tpu.dot_dimension_numbers<[1], [0], [0], [1], [0, 0, 1, 1], [], []>} : vector<8x8xbf16>, vector<8x32xbf16>, vector<8x32xf32> -> vector<8x32xf32>
    %58 = arith.addf %38, %57 : vector<8x32xf32>
    %59 = vector.extract_strided_slice %33 {offsets = [0, 8], sizes = [8, 8], strides = [1, 1]} : vector<8x32xbf16> to vector<8x8xbf16>
    %60 = vector.extract_strided_slice %35 {offsets = [0, 8], sizes = [8, 8], strides = [1, 1]} : vector<8x32xbf16> to vector<8x8xbf16>
    %61 = vector.extract_strided_slice %37 {offsets = [0, 8], sizes = [8, 8], strides = [1, 1]} : vector<8x32xbf16> to vector<8x8xbf16>
    %cst_23 = arith.constant dense<0.000000e+00> : vector<8x8xf32>
    %62 = tpu.matmul %59, %60, %cst_23 {dimension_numbers = #tpu.dot_dimension_numbers<[1], [1], [0], [0], [0, 0, 1, 0], [], []>} : vector<8x8xbf16>, vector<8x8xbf16>, vector<8x8xf32> -> vector<8x8xf32>
    %cst_24 = arith.constant dense<0xFF800000> : vector<8xf32>
    %63 = vector.multi_reduction <maximumf>, %62, %cst_24 [1] : vector<8x8xf32> to vector<8xf32>
    %64 = vector.shape_cast %63 : vector<8xf32> to vector<8x1xf32>
    %65 = vector.broadcast %64 : vector<8x1xf32> to vector<8x8xf32>
    %66 = arith.subf %62, %65 : vector<8x8xf32>
    %67 = math.exp %66 : vector<8x8xf32>
    %cst_25 = arith.constant dense<0.000000e+00> : vector<8xf32>
    %68 = vector.multi_reduction <add>, %67, %cst_25 [1] : vector<8x8xf32> to vector<8xf32>
    %69 = vector.shape_cast %68 : vector<8xf32> to vector<8x1xf32>
    %70 = tpu.reciprocal %69 {approx = true} : vector<8x1xf32> -> vector<8x1xf32>
    %71 = vector.broadcast %70 : vector<8x1xf32> to vector<8x8xf32>
    %72 = arith.mulf %67, %71 : vector<8x8xf32>
    %73 = arith.truncf %72 : vector<8x8xf32> to vector<8x8xbf16>
    %cst_26 = arith.constant dense<0.000000e+00> : vector<8x8xf32>
    %74 = tpu.matmul %73, %61, %cst_26 {dimension_numbers = #tpu.dot_dimension_numbers<[1], [0], [0], [1], [0, 0, 1, 1], [], []>} : vector<8x8xbf16>, vector<8x8xbf16>, vector<8x8xf32> -> vector<8x8xf32>
    %75 = arith.truncf %74 : vector<8x8xf32> to vector<8x8xbf16>
    %c8 = arith.constant 8 : index
    %c0_27 = arith.constant 0 : index
    %76 = vector.load %arg6[%c8, %c0_27] : memref<32x32xbf16, #tpu.memory_space<vmem>>, vector<8x32xbf16>
    %cst_28 = arith.constant dense<0.000000e+00> : vector<8x32xf32>
    %77 = tpu.matmul %75, %76, %cst_28 {dimension_numbers = #tpu.dot_dimension_numbers<[1], [0], [0], [1], [0, 0, 1, 1], [], []>} : vector<8x8xbf16>, vector<8x32xbf16>, vector<8x32xf32> -> vector<8x32xf32>
    %78 = arith.addf %58, %77 : vector<8x32xf32>
    %79 = vector.extract_strided_slice %33 {offsets = [0, 16], sizes = [8, 8], strides = [1, 1]} : vector<8x32xbf16> to vector<8x8xbf16>
    %80 = vector.extract_strided_slice %35 {offsets = [0, 16], sizes = [8, 8], strides = [1, 1]} : vector<8x32xbf16> to vector<8x8xbf16>
    %81 = vector.extract_strided_slice %37 {offsets = [0, 16], sizes = [8, 8], strides = [1, 1]} : vector<8x32xbf16> to vector<8x8xbf16>
    %cst_29 = arith.constant dense<0.000000e+00> : vector<8x8xf32>
    %82 = tpu.matmul %79, %80, %cst_29 {dimension_numbers = #tpu.dot_dimension_numbers<[1], [1], [0], [0], [0, 0, 1, 0], [], []>} : vector<8x8xbf16>, vector<8x8xbf16>, vector<8x8xf32> -> vector<8x8xf32>
    %cst_30 = arith.constant dense<0xFF800000> : vector<8xf32>
    %83 = vector.multi_reduction <maximumf>, %82, %cst_30 [1] : vector<8x8xf32> to vector<8xf32>
    %84 = vector.shape_cast %83 : vector<8xf32> to vector<8x1xf32>
    %85 = vector.broadcast %84 : vector<8x1xf32> to vector<8x8xf32>
    %86 = arith.subf %82, %85 : vector<8x8xf32>
    %87 = math.exp %86 : vector<8x8xf32>
    %cst_31 = arith.constant dense<0.000000e+00> : vector<8xf32>
    %88 = vector.multi_reduction <add>, %87, %cst_31 [1] : vector<8x8xf32> to vector<8xf32>
    %89 = vector.shape_cast %88 : vector<8xf32> to vector<8x1xf32>
    %90 = tpu.reciprocal %89 {approx = true} : vector<8x1xf32> -> vector<8x1xf32>
    %91 = vector.broadcast %90 : vector<8x1xf32> to vector<8x8xf32>
    %92 = arith.mulf %87, %91 : vector<8x8xf32>
    %93 = arith.truncf %92 : vector<8x8xf32> to vector<8x8xbf16>
    %cst_32 = arith.constant dense<0.000000e+00> : vector<8x8xf32>
    %94 = tpu.matmul %93, %81, %cst_32 {dimension_numbers = #tpu.dot_dimension_numbers<[1], [0], [0], [1], [0, 0, 1, 1], [], []>} : vector<8x8xbf16>, vector<8x8xbf16>, vector<8x8xf32> -> vector<8x8xf32>
    %95 = arith.truncf %94 : vector<8x8xf32> to vector<8x8xbf16>
    %c16 = arith.constant 16 : index
    %c0_33 = arith.constant 0 : index
    %96 = vector.load %arg6[%c16, %c0_33] : memref<32x32xbf16, #tpu.memory_space<vmem>>, vector<8x32xbf16>
    %cst_34 = arith.constant dense<0.000000e+00> : vector<8x32xf32>
    %97 = tpu.matmul %95, %96, %cst_34 {dimension_numbers = #tpu.dot_dimension_numbers<[1], [0], [0], [1], [0, 0, 1, 1], [], []>} : vector<8x8xbf16>, vector<8x32xbf16>, vector<8x32xf32> -> vector<8x32xf32>
    %98 = arith.addf %78, %97 : vector<8x32xf32>
    %99 = vector.extract_strided_slice %33 {offsets = [0, 24], sizes = [8, 8], strides = [1, 1]} : vector<8x32xbf16> to vector<8x8xbf16>
    %100 = vector.extract_strided_slice %35 {offsets = [0, 24], sizes = [8, 8], strides = [1, 1]} : vector<8x32xbf16> to vector<8x8xbf16>
    %101 = vector.extract_strided_slice %37 {offsets = [0, 24], sizes = [8, 8], strides = [1, 1]} : vector<8x32xbf16> to vector<8x8xbf16>
    %cst_35 = arith.constant dense<0.000000e+00> : vector<8x8xf32>
    %102 = tpu.matmul %99, %100, %cst_35 {dimension_numbers = #tpu.dot_dimension_numbers<[1], [1], [0], [0], [0, 0, 1, 0], [], []>} : vector<8x8xbf16>, vector<8x8xbf16>, vector<8x8xf32> -> vector<8x8xf32>
    %cst_36 = arith.constant dense<0xFF800000> : vector<8xf32>
    %103 = vector.multi_reduction <maximumf>, %102, %cst_36 [1] : vector<8x8xf32> to vector<8xf32>
    %104 = vector.shape_cast %103 : vector<8xf32> to vector<8x1xf32>
    %105 = vector.broadcast %104 : vector<8x1xf32> to vector<8x8xf32>
    %106 = arith.subf %102, %105 : vector<8x8xf32>
    %107 = math.exp %106 : vector<8x8xf32>
    %cst_37 = arith.constant dense<0.000000e+00> : vector<8xf32>
    %108 = vector.multi_reduction <add>, %107, %cst_37 [1] : vector<8x8xf32> to vector<8xf32>
    %109 = vector.shape_cast %108 : vector<8xf32> to vector<8x1xf32>
    %110 = tpu.reciprocal %109 {approx = true} : vector<8x1xf32> -> vector<8x1xf32>
    %111 = vector.broadcast %110 : vector<8x1xf32> to vector<8x8xf32>
    %112 = arith.mulf %107, %111 : vector<8x8xf32>
    %113 = arith.truncf %112 : vector<8x8xf32> to vector<8x8xbf16>
    %cst_38 = arith.constant dense<0.000000e+00> : vector<8x8xf32>
    %114 = tpu.matmul %113, %101, %cst_38 {dimension_numbers = #tpu.dot_dimension_numbers<[1], [0], [0], [1], [0, 0, 1, 1], [], []>} : vector<8x8xbf16>, vector<8x8xbf16>, vector<8x8xf32> -> vector<8x8xf32>
    %115 = arith.truncf %114 : vector<8x8xf32> to vector<8x8xbf16>
    %c24 = arith.constant 24 : index
    %c0_39 = arith.constant 0 : index
    %116 = vector.load %arg6[%c24, %c0_39] : memref<32x32xbf16, #tpu.memory_space<vmem>>, vector<8x32xbf16>
    %cst_40 = arith.constant dense<0.000000e+00> : vector<8x32xf32>
    %117 = tpu.matmul %115, %116, %cst_40 {dimension_numbers = #tpu.dot_dimension_numbers<[1], [0], [0], [1], [0, 0, 1, 1], [], []>} : vector<8x8xbf16>, vector<8x32xbf16>, vector<8x32xf32> -> vector<8x32xf32>
    %118 = arith.addf %98, %117 : vector<8x32xf32>
    %c0_41 = arith.constant 0 : index
    %c0_42 = arith.constant 0 : index
    %119 = vector.load %arg7[%c0_41, %c0_42] : memref<1x32xf32, #tpu.memory_space<vmem>>, vector<1x32xf32>
    %120 = vector.broadcast %119 : vector<1x32xf32> to vector<8x32xf32>
    %121 = arith.addf %118, %120 : vector<8x32xf32>
    %122 = arith.addf %121, %1 : vector<8x32xf32>
    %c0_43 = arith.constant 0 : index
    %c0_44 = arith.constant 0 : index
    %123 = vector.load %arg8[%c0_43, %c0_44] : memref<1x32xf32, #tpu.memory_space<vmem>>, vector<1x32xf32>
    %c0_45 = arith.constant 0 : index
    %c0_46 = arith.constant 0 : index
    %124 = vector.load %arg9[%c0_45, %c0_46] : memref<1x32xf32, #tpu.memory_space<vmem>>, vector<1x32xf32>
    %cst_47 = arith.constant dense<0.000000e+00> : vector<8xf32>
    %125 = vector.multi_reduction <add>, %122, %cst_47 [1] : vector<8x32xf32> to vector<8xf32>
    %126 = vector.shape_cast %125 : vector<8xf32> to vector<8x1xf32>
    %cst_48 = arith.constant 3.200000e+01 : f32
    %127 = vector.broadcast %cst_48 : f32 to vector<8x1xf32>
    %128 = arith.divf %126, %127 : vector<8x1xf32>
    %129 = vector.broadcast %128 : vector<8x1xf32> to vector<8x32xf32>
    %130 = arith.subf %122, %129 : vector<8x32xf32>
    %131 = arith.mulf %130, %130 : vector<8x32xf32>
    %cst_49 = arith.constant dense<0.000000e+00> : vector<8xf32>
    %132 = vector.multi_reduction <add>, %131, %cst_49 [1] : vector<8x32xf32> to vector<8xf32>
    %133 = vector.shape_cast %132 : vector<8xf32> to vector<8x1xf32>
    %cst_50 = arith.constant 3.200000e+01 : f32
    %134 = vector.broadcast %cst_50 : f32 to vector<8x1xf32>
    %135 = arith.divf %133, %134 : vector<8x1xf32>
    %136 = vector.broadcast %128 : vector<8x1xf32> to vector<8x32xf32>
    %137 = arith.subf %122, %136 : vector<8x32xf32>
    %cst_51 = arith.constant 9.99999974E-6 : f32
    %138 = vector.broadcast %cst_51 : f32 to vector<8x1xf32>
    %139 = arith.addf %135, %138 : vector<8x1xf32>
    %140 = math.rsqrt %139 : vector<8x1xf32>
    %141 = vector.broadcast %140 : vector<8x1xf32> to vector<8x32xf32>
    %142 = arith.mulf %137, %141 : vector<8x32xf32>
    %143 = vector.broadcast %123 : vector<1x32xf32> to vector<8x32xf32>
    %144 = arith.mulf %142, %143 : vector<8x32xf32>
    %145 = vector.broadcast %124 : vector<1x32xf32> to vector<8x32xf32>
    %146 = arith.addf %144, %145 : vector<8x32xf32>
    %147 = arith.truncf %146 : vector<8x32xf32> to vector<8x32xbf16>
    %c0_52 = arith.constant 0 : index
    %c0_53 = arith.constant 0 : index
    %148 = vector.load %arg10[%c0_52, %c0_53] : memref<32x64xbf16, #tpu.memory_space<vmem>>, vector<32x64xbf16>
    %cst_54 = arith.constant dense<0.000000e+00> : vector<8x64xf32>
    %149 = tpu.matmul %147, %148, %cst_54 {dimension_numbers = #tpu.dot_dimension_numbers<[1], [0], [0], [1], [0, 0, 1, 1], [], []>} : vector<8x32xbf16>, vector<32x64xbf16>, vector<8x64xf32> -> vector<8x64xf32>
    %c0_55 = arith.constant 0 : index
    %c0_56 = arith.constant 0 : index
    %150 = vector.load %arg11[%c0_55, %c0_56] : memref<1x64xf32, #tpu.memory_space<vmem>>, vector<1x64xf32>
    %151 = vector.broadcast %150 : vector<1x64xf32> to vector<8x64xf32>
    %152 = arith.addf %149, %151 : vector<8x64xf32>
    %cst_57 = arith.constant 5.000000e-01 : f32
    %153 = vector.broadcast %cst_57 : f32 to vector<8x64xf32>
    %154 = arith.mulf %153, %152 : vector<8x64xf32>
    %cst_58 = arith.constant 4.471500e-02 : f32
    %155 = vector.broadcast %cst_58 : f32 to vector<8x64xf32>
    %156 = arith.mulf %155, %152 : vector<8x64xf32>
    %157 = arith.mulf %156, %152 : vector<8x64xf32>
    %158 = arith.mulf %157, %152 : vector<8x64xf32>
    %159 = arith.addf %152, %158 : vector<8x64xf32>
    %cst_59 = arith.constant 0.797884583 : f32
    %160 = vector.broadcast %cst_59 : f32 to vector<8x64xf32>
    %161 = arith.mulf %160, %159 : vector<8x64xf32>
    %162 = math.tanh %161 : vector<8x64xf32>
    %cst_60 = arith.constant 1.000000e+00 : f32
    %163 = vector.broadcast %cst_60 : f32 to vector<8x64xf32>
    %164 = arith.addf %163, %162 : vector<8x64xf32>
    %165 = arith.mulf %154, %164 : vector<8x64xf32>
    %166 = arith.truncf %165 : vector<8x64xf32> to vector<8x64xbf16>
    %c0_61 = arith.constant 0 : index
    %c0_62 = arith.constant 0 : index
    %167 = vector.load %arg12[%c0_61, %c0_62] : memref<64x32xbf16, #tpu.memory_space<vmem>>, vector<64x32xbf16>
    %cst_63 = arith.constant dense<0.000000e+00> : vector<8x32xf32>
    %168 = tpu.matmul %166, %167, %cst_63 {dimension_numbers = #tpu.dot_dimension_numbers<[1], [0], [0], [1], [0, 0, 1, 1], [], []>} : vector<8x64xbf16>, vector<64x32xbf16>, vector<8x32xf32> -> vector<8x32xf32>
    %c0_64 = arith.constant 0 : index
    %c0_65 = arith.constant 0 : index
    %169 = vector.load %arg13[%c0_64, %c0_65] : memref<1x32xf32, #tpu.memory_space<vmem>>, vector<1x32xf32>
    %170 = vector.broadcast %169 : vector<1x32xf32> to vector<8x32xf32>
    %171 = arith.addf %168, %170 : vector<8x32xf32>
    %172 = arith.addf %171, %122 : vector<8x32xf32>
    %c0_66 = arith.constant 0 : index
    %c0_67 = arith.constant 0 : index
    %c0_68 = arith.constant 0 : index
    %173 = vector.load %arg14[%c0_66, %c0_67, %c0_68] : memref<1x8x32xf32, #tpu.memory_space<vmem>>, vector<1x8x32xf32>
    %174 = vector.shape_cast %173 : vector<1x8x32xf32> to vector<8x32xf32>
    %175 = vector.shape_cast %172 : vector<8x32xf32> to vector<1x8x32xf32>
    tpu.vector_store %arg14[%c0_66, %c0_67, %c0_68], %175 {strides = array<i32>} : memref<1x8x32xf32, #tpu.memory_space<vmem>>, vector<1x8x32xf32>,
    return
  }
  func.func @transform_0(%arg0: i32) -> (i32, i32, i32) {
    %c0_i32 = arith.constant 0 : i32
    %c0_i32_0 = arith.constant 0 : i32
    %c0_i32_1 = arith.constant 0 : i32
    return %arg0, %c0_i32, %c0_i32_0 : i32, i32, i32
  }
  func.func @transform_1(%arg0: i32) -> (i32, i32) {
    %c0_i32 = arith.constant 0 : i32
    %c0_i32_0 = arith.constant 0 : i32
    %c0_i32_1 = arith.constant 0 : i32
    return %c0_i32, %c0_i32_0 : i32, i32
  }
  func.func @transform_2(%arg0: i32) -> (i32, i32) {
    %c0_i32 = arith.constant 0 : i32
    %c0_i32_0 = arith.constant 0 : i32
    %c0_i32_1 = arith.constant 0 : i32
    return %c0_i32, %c0_i32_0 : i32, i32
  }
  func.func @transform_3(%arg0: i32) -> (i32, i32) {
    %c0_i32 = arith.constant 0 : i32
    %c0_i32_0 = arith.constant 0 : i32
    %c0_i32_1 = arith.constant 0 : i32
    return %c0_i32, %c0_i32_0 : i32, i32
  }
  func.func @transform_4(%arg0: i32) -> (i32, i32) {
    %c0_i32 = arith.constant 0 : i32
    %c0_i32_0 = arith.constant 0 : i32
    %c0_i32_1 = arith.constant 0 : i32
    return %c0_i32, %c0_i32_0 : i32, i32
  }
  func.func @transform_5(%arg0: i32) -> (i32, i32) {
    %c0_i32 = arith.constant 0 : i32
    %c0_i32_0 = arith.constant 0 : i32
    %c0_i32_1 = arith.constant 0 : i32
    return %c0_i32, %c0_i32_0 : i32, i32
  }
  func.func @transform_6(%arg0: i32) -> (i32, i32) {
    %c0_i32 = arith.constant 0 : i32
    %c0_i32_0 = arith.constant 0 : i32
    %c0_i32_1 = arith.constant 0 : i32
    return %c0_i32, %c0_i32_0 : i32, i32
  }
  func.func @transform_7(%arg0: i32) -> (i32, i32) {
    %c0_i32 = arith.constant 0 : i32
    %c0_i32_0 = arith.constant 0 : i32
    %c0_i32_1 = arith.constant 0 : i32
    return %c0_i32, %c0_i32_0 : i32, i32
  }
  func.func @transform_8(%arg0: i32) -> (i32, i32) {
    %c0_i32 = arith.constant 0 : i32
    %c0_i32_0 = arith.constant 0 : i32
    %c0_i32_1 = arith.constant 0 : i32
    return %c0_i32, %c0_i32_0 : i32, i32
  }
  func.func @transform_9(%arg0: i32) -> (i32, i32) {
    %c0_i32 = arith.constant 0 : i32
    %c0_i32_0 = arith.constant 0 : i32
    %c0_i32_1 = arith.constant 0 : i32
    return %c0_i32, %c0_i32_0 : i32, i32
  }
  func.func @transform_10(%arg0: i32) -> (i32, i32) {
    %c0_i32 = arith.constant 0 : i32
    %c0_i32_0 = arith.constant 0 : i32
    %c0_i32_1 = arith.constant 0 : i32
    return %c0_i32, %c0_i32_0 : i32, i32
  }
  func.func @transform_11(%arg0: i32) -> (i32, i32) {
    %c0_i32 = arith.constant 0 : i32
    %c0_i32_0 = arith.constant 0 : i32
    %c0_i32_1 = arith.constant 0 : i32
    return %c0_i32, %c0_i32_0 : i32, i32
  }
  func.func @transform_12(%arg0: i32) -> (i32, i32) {
    %c0_i32 = arith.constant 0 : i32
    %c0_i32_0 = arith.constant 0 : i32
    %c0_i32_1 = arith.constant 0 : i32
    return %c0_i32, %c0_i32_0 : i32, i32
  }
  func.func @transform_13(%arg0: i32) -> (i32, i32, i32) {
    %c0_i32 = arith.constant 0 : i32
    %c0_i32_0 = arith.constant 0 : i32
    %c0_i32_1 = arith.constant 0 : i32
    return %arg0, %c0_i32, %c0_i32_0 : i32, i32, i32
  }
}

</mosaic_0001>

<llo_original>
// kernel: tpu_custom_call.1
$region0: #{tpu_custom_call.1}
  #allocation0 [shape = 'u32[]', space=smem, size = 0x4, offset = 0x4, fixed_abs, tag = 'smem constant byte address 0x4 - core index']
  #allocation1 [shape = 'u32[144,128]{1,0:T(1,128)}', space=vmem, size = 0x12000, scoped, tag = 'internal scratch']
  %s0 = inlined_call_operand.vmem [shape: f32[2,8,32], index: 0, kind: input, shape index: {}]
  %s1 = inlined_call_operand.vmem [shape: f32[1,32], index: 1, kind: input, shape index: {}]
  %s2 = inlined_call_operand.vmem [shape: f32[1,32], index: 2, kind: input, shape index: {}]
  %s3 = inlined_call_operand.vmem [shape: bf16[32,96], index: 3, kind: input, shape index: {}]
  %s4 = inlined_call_operand.hbm [shape: f32[1,96], index: 4, kind: input, shape index: {}]
  %s5 = inlined_call_operand.vmem [shape: bf16[32,32], index: 5, kind: input, shape index: {}]
  %s6 = inlined_call_operand.hbm [shape: f32[1,32], index: 6, kind: input, shape index: {}]
  %s7 = inlined_call_operand.hbm [shape: f32[1,32], index: 7, kind: input, shape index: {}]
  %s8 = inlined_call_operand.hbm [shape: f32[1,32], index: 8, kind: input, shape index: {}]
  %s9 = inlined_call_operand.vmem [shape: bf16[32,64], index: 9, kind: input, shape index: {}]
  %s10 = inlined_call_operand.vmem [shape: f32[1,64], index: 10, kind: input, shape index: {}]
  %s11 = inlined_call_operand.vmem [shape: bf16[64,32], index: 11, kind: input, shape index: {}]
  %s12 = inlined_call_operand.vmem [shape: f32[1,32], index: 12, kind: input, shape index: {}]
  %s13 = inlined_call_operand.hbm [shape: f32[2,8,32], index: 13, kind: output, shape index: {}]
  %s14 = sld [smem:[#allocation0]]
  $region101: #{tpu_custom_call.1} parent=0
    _
  %s16 = ssub.s32 1, %s14
  %s17 = scalar_select 0, %s16, %s14
  $region1: #{tpu_custom_call.1} parent=0
    #allocation2 [shape = 'u8[512]{0}', space=vmem, size = 0x400, scoped, tag = 'input window, operand 4, single buffered']
    #allocation3 [shape = 's32[2]{0}', space=sflag, size = 0x8, scoped, tag = 'scoped memory for tpu_custom_call.1']
    #allocation4 [shape = 's32[2]{0}', space=sflag, size = 0x8, scoped, tag = 'scoped memory for tpu_custom_call.1']
    #allocation5 [shape = 'u8[512]{0}', space=vmem, size = 0x400, scoped, tag = 'input window, operand 6, single buffered']
    #allocation6 [shape = 's32[1]{0}', space=sflag, size = 0x4, scoped, tag = 'scoped memory for tpu_custom_call.1']
    #allocation7 [shape = 'u8[512]{0}', space=vmem, size = 0x400, scoped, tag = 'input window, operand 7, single buffered']
    #allocation8 [shape = 'u8[512]{0}', space=vmem, size = 0x400, scoped, tag = 'input window, operand 8, single buffered']
    #allocation9 [shape = 's32[1]{0}', space=sflag, size = 0x4, scoped, tag = 'scoped memory for tpu_custom_call.1']
    #allocation10 [shape = 'u8[8192]{0}', space=vmem, size = 0x2000, scoped, tag = 'output window, operand 0']
    %18 = vsyncpa [#allocation3], 0
    %19 = vsyncpa [#allocation6], 0
    %20 = vsyncpa [#allocation9], 0
    %21 = vsyncpa [#allocation4], 0
    %s22 = scalar_lea.sflag [#allocation4], 1
    %23 = vsyncpa %s22, 0
    loop: start=0, step=1, limit=4
    $region2: #{tpu_custom_call.1} parent=1 // loop_pre_header
      _
    $region3: #{tpu_custom_call.1} parent=1 // loop_header
      %s25 = sphi 0, %s29
      %p26 = scmp.ge.s32.totalorder %s25, 4
      %s35 = sphi 0, %s37
      %s38 = sphi 0, %s35
      %s39 = sphi 0, %s38
      %s55 = sphi 0, %s39
      %s59 = sphi 0, %s59
      %s61 = sphi 0, %s59
      %s62 = sphi 0, %s61
      %s76 = sphi 0, %s62
      %s80 = sphi 0, %s80
      %s82 = sphi 0, %s80
      %s83 = sphi 0, %s82
      %s97 = sphi 0, %s83
      %s101 = sphi 0, %s101
      %s103 = sphi 0, %s101
      %s104 = sphi 0, %s103
      %s118 = sphi 0, %s104
      %s122 = sphi 0, %s122
      %s124 = sphi 0, %s122
      %s125 = sphi 0, %s124
      %s139 = sphi 0, %s125
      %s143 = sphi 0, %s143
      %s145 = sphi 0, %s143
      %s146 = sphi 0, %s145
      %s160 = sphi 0, %s146
      %s164 = sphi 0, %s164
      %s166 = sphi 0, %s164
      %s167 = sphi 0, %s166
      %s181 = sphi 0, %s167
      %s185 = sphi 0, %s185
      %s187 = sphi 0, %s185
      %s188 = sphi 0, %s187
      %s202 = sphi 0, %s188
      %s206 = sphi 0, %s206
      %s208 = sphi 0, %s206
      %s209 = sphi 0, %s208
      %s223 = sphi 0, %s209
      %s227 = sphi 0, %s227
      %s229 = sphi 0, %s227
      %s230 = sphi 0, %s229
      %s244 = sphi 0, %s230
      %s248 = sphi 0, %s248
      %s250 = sphi 0, %s248
      %s251 = sphi 0, %s250
      %s265 = sphi 0, %s251
      %s269 = sphi 0, %s269
      %s271 = sphi 0, %s269
      %s272 = sphi 0, %s271
      %s286 = sphi 0, %s272
      %s290 = sphi 0, %s290
      %s292 = sphi 0, %s290
      %s293 = sphi 0, %s292
      %s307 = sphi 0, %s293
      %s313 = sphi 0, %s315
      %s316 = sphi 0, %s313
      %s317 = sphi 0, %s316
      %s333 = sphi 0, %s317
    $region4: #{tpu_custom_call.1} parent=1 // loop_header_branch
      %28 = sbr.rel (%p26) target = $region8
    $region5: #{tpu_custom_call.1} parent=1 // loop_body
      %s30 = ssub.s32 %s25, 1
      %s31 = ssub.s32 %s25, 2
      %s32 = sadd.s32 %s25, 1
      %s33 = ssub.s32 %s25, %s32
      %p34 = scmp.eq.s32.totalorder %s33, 0
      %s36 = sadd.s32 %s35, 1
      %s37 = scalar_select %p34, %s35, %s36
      %p40 = pneg %p34
      %p41 = scmp.eq.s32.totalorder %s25, 1
      %p42 = por %p40, %p41
      %p43 = scmp.ne.s32.totalorder %s35, %s38
      %p44 = scmp.eq.s32.totalorder %s25, 0
      %p45 = por %p43, %p44
      %p46 = scmp.ne.s32.totalorder %s35, %s38
      %p47 = scmp.eq.s32.totalorder %s30, 1
      %p48 = por %p46, %p47
      %p49 = scmp.ne.s32.totalorder %s38, %s39
      %p50 = scmp.eq.s32.totalorder %s30, 0
      %p51 = por %p49, %p50
      %p52 = scmp.ne.s32.totalorder %s38, %s39
      %p53 = scmp.eq.s32.totalorder %s31, 1
      %p54 = por %p52, %p53
      %p56 = scmp.ne.s32.totalorder %s39, %s55
      %p57 = scmp.eq.s32.totalorder %s31, 0
      %p58 = por %p56, %p57
      %s60 = sadd.s32 %s59, 1
      %p63 = scmp.eq.s32.totalorder %s25, 1
      %p64 = scmp.ne.s32.totalorder %s59, %s61
      %p65 = scmp.eq.s32.totalorder %s25, 0
      %p66 = por %p64, %p65
      %p67 = scmp.ne.s32.totalorder %s59, %s61
      %p68 = scmp.eq.s32.totalorder %s30, 1
      %p69 = por %p67, %p68
      %p70 = scmp.ne.s32.totalorder %s61, %s62
      %p71 = scmp.eq.s32.totalorder %s30, 0
      %p72 = por %p70, %p71
      %p73 = scmp.ne.s32.totalorder %s61, %s62
      %p74 = scmp.eq.s32.totalorder %s31, 1
      %p75 = por %p73, %p74
      %p77 = scmp.ne.s32.totalorder %s62, %s76
      %p78 = scmp.eq.s32.totalorder %s31, 0
      %p79 = por %p77, %p78
      %s81 = sadd.s32 %s80, 1
      %p84 = scmp.eq.s32.totalorder %s25, 1
      %p85 = scmp.ne.s32.totalorder %s80, %s82
      %p86 = scmp.eq.s32.totalorder %s25, 0
      %p87 = por %p85, %p86
      %p88 = scmp.ne.s32.totalorder %s80, %s82
      %p89 = scmp.eq.s32.totalorder %s30, 1
      %p90 = por %p88, %p89
      %p91 = scmp.ne.s32.totalorder %s82, %s83
      %p92 = scmp.eq.s32.totalorder %s30, 0
      %p93 = por %p91, %p92
      %p94 = scmp.ne.s32.totalorder %s82, %s83
      %p95 = scmp.eq.s32.totalorder %s31, 1
      %p96 = por %p94, %p95
      %p98 = scmp.ne.s32.totalorder %s83, %s97
      %p99 = scmp.eq.s32.totalorder %s31, 0
      %p100 = por %p98, %p99
      %s102 = sadd.s32 %s101, 1
      %p105 = scmp.eq.s32.totalorder %s25, 1
      %p106 = scmp.ne.s32.totalorder %s101, %s103
      %p107 = scmp.eq.s32.totalorder %s25, 0
      %p108 = por %p106, %p107
      %p109 = scmp.ne.s32.totalorder %s101, %s103
      %p110 = scmp.eq.s32.totalorder %s30, 1
      %p111 = por %p109, %p110
      %p112 = scmp.ne.s32.totalorder %s103, %s104
      %p113 = scmp.eq.s32.totalorder %s30, 0
      %p114 = por %p112, %p113
      %p115 = scmp.ne.s32.totalorder %s103, %s104
      %p116 = scmp.eq.s32.totalorder %s31, 1
      %p117 = por %p115, %p116
      %p119 = scmp.ne.s32.totalorder %s104, %s118
      %p120 = scmp.eq.s32.totalorder %s31, 0
      %p121 = por %p119, %p120
      %s123 = sadd.s32 %s122, 1
      %p126 = scmp.eq.s32.totalorder %s25, 1
      %p127 = scmp.ne.s32.totalorder %s122, %s124
      %p128 = scmp.eq.s32.totalorder %s25, 0
      %p129 = por %p127, %p128
      %p130 = scmp.ne.s32.totalorder %s122, %s124
      %p131 = scmp.eq.s32.totalorder %s30, 1
      %p132 = por %p130, %p131
      %p133 = scmp.ne.s32.totalorder %s124, %s125
      %p134 = scmp.eq.s32.totalorder %s30, 0
      %p135 = por %p133, %p134
      %p136 = scmp.ne.s32.totalorder %s124, %s125
      %p137 = scmp.eq.s32.totalorder %s31, 1
      %p138 = por %p136, %p137
      %p140 = scmp.ne.s32.totalorder %s125, %s139
      %p141 = scmp.eq.s32.totalorder %s31, 0
      %p142 = por %p140, %p141
      %s144 = sadd.s32 %s143, 1
      %p147 = scmp.eq.s32.totalorder %s25, 1
      %p148 = scmp.ne.s32.totalorder %s143, %s145
      %p149 = scmp.eq.s32.totalorder %s25, 0
      %p150 = por %p148, %p149
      %p151 = scmp.ne.s32.totalorder %s143, %s145
      %p152 = scmp.eq.s32.totalorder %s30, 1
      %p153 = por %p151, %p152
      %p154 = scmp.ne.s32.totalorder %s145, %s146
      %p155 = scmp.eq.s32.totalorder %s30, 0
      %p156 = por %p154, %p155
      %p157 = scmp.ne.s32.totalorder %s145, %s146
      %p158 = scmp.eq.s32.totalorder %s31, 1
      %p159 = por %p157, %p158
      %p161 = scmp.ne.s32.totalorder %s146, %s160
      %p162 = scmp.eq.s32.totalorder %s31, 0
      %p163 = por %p161, %p162
      %s165 = sadd.s32 %s164, 1
      %p168 = scmp.eq.s32.totalorder %s25, 1
      %p169 = scmp.ne.s32.totalorder %s164, %s166
      %p170 = scmp.eq.s32.totalorder %s25, 0
      %p171 = por %p169, %p170
      %p172 = scmp.ne.s32.totalorder %s164, %s166
      %p173 = scmp.eq.s32.totalorder %s30, 1
      %p174 = por %p172, %p173
      %p175 = scmp.ne.s32.totalorder %s166, %s167
      %p176 = scmp.eq.s32.totalorder %s30, 0
      %p177 = por %p175, %p176
      %p178 = scmp.ne.s32.totalorder %s166, %s167
      %p179 = scmp.eq.s32.totalorder %s31, 1
      %p180 = por %p178, %p179
      %p182 = scmp.ne.s32.totalorder %s167, %s181
      %p183 = scmp.eq.s32.totalorder %s31, 0
      %p184 = por %p182, %p183
      %s186 = sadd.s32 %s185, 1
      %p189 = scmp.eq.s32.totalorder %s25, 1
      %p190 = scmp.ne.s32.totalorder %s185, %s187
      %p191 = scmp.eq.s32.totalorder %s25, 0
      %p192 = por %p190, %p191
      %p193 = scmp.ne.s32.totalorder %s185, %s187
      %p194 = scmp.eq.s32.totalorder %s30, 1
      %p195 = por %p193, %p194
      %p196 = scmp.ne.s32.totalorder %s187, %s188
      %p197 = scmp.eq.s32.totalorder %s30, 0
      %p198 = por %p196, %p197
      %p199 = scmp.ne.s32.totalorder %s187, %s188
      %p200 = scmp.eq.s32.totalorder %s31, 1
      %p201 = por %p199, %p200
      %p203 = scmp.ne.s32.totalorder %s188, %s202
      %p204 = scmp.eq.s32.totalorder %s31, 0
      %p205 = por %p203, %p204
      %s207 = sadd.s32 %s206, 1
      %p210 = scmp.eq.s32.totalorder %s25, 1
      %p211 = scmp.ne.s32.totalorder %s206, %s208
      %p212 = scmp.eq.s32.totalorder %s25, 0
      %p213 = por %p211, %p212
      %p214 = scmp.ne.s32.totalorder %s206, %s208
      %p215 = scmp.eq.s32.totalorder %s30, 1
      %p216 = por %p214, %p215
      %p217 = scmp.ne.s32.totalorder %s208, %s209
      %p218 = scmp.eq.s32.totalorder %s30, 0
      %p219 = por %p217, %p218
      %p220 = scmp.ne.s32.totalorder %s208, %s209
      %p221 = scmp.eq.s32.totalorder %s31, 1
      %p222 = por %p220, %p221
      %p224 = scmp.ne.s32.totalorder %s209, %s223
      %p225 = scmp.eq.s32.totalorder %s31, 0
      %p226 = por %p224, %p225
      %s228 = sadd.s32 %s227, 1
      %p231 = scmp.eq.s32.totalorder %s25, 1
      %p232 = scmp.ne.s32.totalorder %s227, %s229
      %p233 = scmp.eq.s32.totalorder %s25, 0
      %p234 = por %p232, %p233
      %p235 = scmp.ne.s32.totalorder %s227, %s229
      %p236 = scmp.eq.s32.totalorder %s30, 1
      %p237 = por %p235, %p236
      %p238 = scmp.ne.s32.totalorder %s229, %s230
      %p239 = scmp.eq.s32.totalorder %s30, 0
      %p240 = por %p238, %p239
      %p241 = scmp.ne.s32.totalorder %s229, %s230
      %p242 = scmp.eq.s32.totalorder %s31, 1
      %p243 = por %p241, %p242
      %p245 = scmp.ne.s32.totalorder %s230, %s244
      %p246 = scmp.eq.s32.totalorder %s31, 0
      %p247 = por %p245, %p246
      %s249 = sadd.s32 %s248, 1
      %p252 = scmp.eq.s32.totalorder %s25, 1
      %p253 = scmp.ne.s32.totalorder %s248, %s250
      %p254 = scmp.eq.s32.totalorder %s25, 0
      %p255 = por %p253, %p254
      %p256 = scmp.ne.s32.totalorder %s248, %s250
      %p257 = scmp.eq.s32.totalorder %s30, 1
      %p258 = por %p256, %p257
      %p259 = scmp.ne.s32.totalorder %s250, %s251
      %p260 = scmp.eq.s32.totalorder %s30, 0
      %p261 = por %p259, %p260
      %p262 = scmp.ne.s32.totalorder %s250, %s251
      %p263 = scmp.eq.s32.totalorder %s31, 1
      %p264 = por %p262, %p263
      %p266 = scmp.ne.s32.totalorder %s251, %s265
      %p267 = scmp.eq.s32.totalorder %s31, 0
      %p268 = por %p266, %p267
      %s270 = sadd.s32 %s269, 1
      %p273 = scmp.eq.s32.totalorder %s25, 1
      %p274 = scmp.ne.s32.totalorder %s269, %s271
      %p275 = scmp.eq.s32.totalorder %s25, 0
      %p276 = por %p274, %p275
      %p277 = scmp.ne.s32.totalorder %s269, %s271
      %p278 = scmp.eq.s32.totalorder %s30, 1
      %p279 = por %p277, %p278
      %p280 = scmp.ne.s32.totalorder %s271, %s272
      %p281 = scmp.eq.s32.totalorder %s30, 0
      %p282 = por %p280, %p281
      %p283 = scmp.ne.s32.totalorder %s271, %s272
      %p284 = scmp.eq.s32.totalorder %s31, 1
      %p285 = por %p283, %p284
      %p287 = scmp.ne.s32.totalorder %s272, %s286
      %p288 = scmp.eq.s32.totalorder %s31, 0
      %p289 = por %p287, %p288
      %s291 = sadd.s32 %s290, 1
      %p294 = scmp.eq.s32.totalorder %s25, 1
      %p295 = scmp.ne.s32.totalorder %s290, %s292
      %p296 = scmp.eq.s32.totalorder %s25, 0
      %p297 = por %p295, %p296
      %p298 = scmp.ne.s32.totalorder %s290, %s292
      %p299 = scmp.eq.s32.totalorder %s30, 1
      %p300 = por %p298, %p299
      %p301 = scmp.ne.s32.totalorder %s292, %s293
      %p302 = scmp.eq.s32.totalorder %s30, 0
      %p303 = por %p301, %p302
      %p304 = scmp.ne.s32.totalorder %s292, %s293
      %p305 = scmp.eq.s32.totalorder %s31, 1
      %p306 = por %p304, %p305
      %p308 = scmp.ne.s32.totalorder %s293, %s307
      %p309 = scmp.eq.s32.totalorder %s31, 0
      %p310 = por %p308, %p309
      %s311 = ssub.s32 %s25, %s32
      %p312 = scmp.eq.s32.totalorder %s311, 0
      %s314 = sadd.s32 %s313, 1
      %s315 = scalar_select %p312, %s313, %s314
      %p318 = pneg %p312
      %p319 = scmp.eq.s32.totalorder %s25, 1
      %p320 = por %p318, %p319
      %p321 = scmp.ne.s32.totalorder %s313, %s316
      %p322 = scmp.eq.s32.totalorder %s25, 0
      %p323 = por %p321, %p322
      %p324 = scmp.ne.s32.totalorder %s313, %s316
      %p325 = scmp.eq.s32.totalorder %s30, 1
      %p326 = por %p324, %p325
      %p327 = scmp.ne.s32.totalorder %s316, %s317
      %p328 = scmp.eq.s32.totalorder %s30, 0
      %p329 = por %p327, %p328
      %p330 = scmp.ne.s32.totalorder %s316, %s317
      %p331 = scmp.eq.s32.totalorder %s31, 1
      %p332 = por %p330, %p331
      %p334 = scmp.ne.s32.totalorder %s317, %s333
      %p335 = scmp.eq.s32.totalorder %s31, 0
      %p336 = por %p334, %p335
      %p337 = scmp.le.s32.totalorder 1, %s25
      %p338 = scmp.lt.s32.totalorder %s25, 3
      %p339 = pnand %p337, %p338
      %p340 = pneg %p339
      // Predicated region
      $region9: #{tpu_custom_call.1} parent=5 // pred_check
        _
      $region10: #{tpu_custom_call.1} parent=5 // pred_check_branch
        %342 = sbr.rel (%p339) target = $region12
      $region11: #{tpu_custom_call.1} parent=5 // pred_region
        %s343 = ssub.s32 %s25, 1
        // Predicated region
        $region13: #{tpu_custom_call.1} parent=11 // pred_check
          %p344 = pneg %p72
        $region14: #{tpu_custom_call.1} parent=11 // pred_check_branch
          %346 = sbr.rel (%p344) target = $region16
        $region15: #{tpu_custom_call.1} parent=11 // pred_region
          _
        $region16: #{tpu_custom_call.1} parent=11 // pred_fallthru
          _
        // Predicated region
        $region17: #{tpu_custom_call.1} parent=11 // pred_check
          %p347 = pneg %p93
        $region18: #{tpu_custom_call.1} parent=11 // pred_check_branch
          %349 = sbr.rel (%p347) target = $region20
        $region19: #{tpu_custom_call.1} parent=11 // pred_region
          _
        $region20: #{tpu_custom_call.1} parent=11 // pred_fallthru
          _
        // Predicated region
        $region21: #{tpu_custom_call.1} parent=11 // pred_check
          %p350 = pneg %p114
        $region22: #{tpu_custom_call.1} parent=11 // pred_check_branch
          %352 = sbr.rel (%p350) target = $region24
        $region23: #{tpu_custom_call.1} parent=11 // pred_region
          _
        $region24: #{tpu_custom_call.1} parent=11 // pred_fallthru
          _
        // Predicated region
        $region25: #{tpu_custom_call.1} parent=11 // pred_check
          %p353 = pneg %p135
        $region26: #{tpu_custom_call.1} parent=11 // pred_check_branch
          %355 = sbr.rel (%p353) target = $region28
        $region27: #{tpu_custom_call.1} parent=11 // pred_region
          %s357 = ssub.s32 16, 16
          %358 = vsyncadd [#allocation3], %s357
          %s360 = sshll.u32 [#allocation2], 4
          %s361 = int_to_ptr.vmem [resolvable:$true] %s360
          %363 = dma.hbm_to_vmem [thread:$0]  %s4, 16, %s361, [#allocation3]
        $region28: #{tpu_custom_call.1} parent=11 // pred_fallthru
          _
        // Predicated region
        $region29: #{tpu_custom_call.1} parent=11 // pred_check
          %p364 = pneg %p156
        $region30: #{tpu_custom_call.1} parent=11 // pred_check_branch
          %366 = sbr.rel (%p364) target = $region32
        $region31: #{tpu_custom_call.1} parent=11 // pred_region
          _
        $region32: #{tpu_custom_call.1} parent=11 // pred_fallthru
          _
        // Predicated region
        $region33: #{tpu_custom_call.1} parent=11 // pred_check
          %p367 = pneg %p177
        $region34: #{tpu_custom_call.1} parent=11 // pred_check_branch
          %369 = sbr.rel (%p367) target = $region36
        $region35: #{tpu_custom_call.1} parent=11 // pred_region
          %s371 = ssub.s32 16, 16
          %372 = vsyncadd [#allocation6], %s371
          %s374 = sshll.u32 [#allocation5], 4
          %s375 = int_to_ptr.vmem [resolvable:$true] %s374
          %377 = dma.hbm_to_vmem [thread:$0]  %s6, 16, %s375, [#allocation6]
        $region36: #{tpu_custom_call.1} parent=11 // pred_fallthru
          _
        // Predicated region
        $region37: #{tpu_custom_call.1} parent=11 // pred_check
          %p378 = pneg %p198
        $region38: #{tpu_custom_call.1} parent=11 // pred_check_branch
          %380 = sbr.rel (%p378) target = $region40
        $region39: #{tpu_custom_call.1} parent=11 // pred_region
          %s382 = ssub.s32 16, 16
          %383 = vsyncadd [#allocation6], %s382
          %s385 = sshll.u32 [#allocation7], 4
          %s386 = int_to_ptr.vmem [resolvable:$true] %s385
          %388 = dma.hbm_to_vmem [thread:$0]  %s7, 16, %s386, [#allocation6]
        $region40: #{tpu_custom_call.1} parent=11 // pred_fallthru
          _
        // Predicated region
        $region41: #{tpu_custom_call.1} parent=11 // pred_check
          %p389 = pneg %p219
        $region42: #{tpu_custom_call.1} parent=11 // pred_check_branch
          %391 = sbr.rel (%p389) target = $region44
        $region43: #{tpu_custom_call.1} parent=11 // pred_region
          %s393 = ssub.s32 16, 16
          %394 = vsyncadd [#allocation9], %s393
          %s396 = sshll.u32 [#allocation8], 4
          %s397 = int_to_ptr.vmem [resolvable:$true] %s396
          %399 = dma.hbm_to_vmem [thread:$0]  %s8, 16, %s397, [#allocation9]
        $region44: #{tpu_custom_call.1} parent=11 // pred_fallthru
          _
        // Predicated region
        $region45: #{tpu_custom_call.1} parent=11 // pred_check
          %p400 = pneg %p240
        $region46: #{tpu_custom_call.1} parent=11 // pred_check_branch
          %402 = sbr.rel (%p400) target = $region48
        $region47: #{tpu_custom_call.1} parent=11 // pred_region
          _
        $region48: #{tpu_custom_call.1} parent=11 // pred_fallthru
          _
        // Predicated region
        $region49: #{tpu_custom_call.1} parent=11 // pred_check
          %p403 = pneg %p261
        $region50: #{tpu_custom_call.1} parent=11 // pred_check_branch
          %405 = sbr.rel (%p403) target = $region52
        $region51: #{tpu_custom_call.1} parent=11 // pred_region
          _
        $region52: #{tpu_custom_call.1} parent=11 // pred_fallthru
          _
        // Predicated region
        $region53: #{tpu_custom_call.1} parent=11 // pred_check
          %p406 = pneg %p282
        $region54: #{tpu_custom_call.1} parent=11 // pred_check_branch
          %408 = sbr.rel (%p406) target = $region56
        $region55: #{tpu_custom_call.1} parent=11 // pred_region
          _
        $region56: #{tpu_custom_call.1} parent=11 // pred_fallthru
          _
        // Predicated region
        $region57: #{tpu_custom_call.1} parent=11 // pred_check
          %p409 = pneg %p303
        $region58: #{tpu_custom_call.1} parent=11 // pred_check_branch
          %411 = sbr.rel (%p409) target = $region60
        $region59: #{tpu_custom_call.1} parent=11 // pred_region
          _
        $region60: #{tpu_custom_call.1} parent=11 // pred_fallthru
          _
      $region12: #{tpu_custom_call.1} parent=5 // pred_fallthru
        _
      %p412 = scmp.lt.s32.totalorder %s25, 2
      // Predicated region
      $region61: #{tpu_custom_call.1} parent=5 // pred_check
        %p413 = pneg %p412
      $region62: #{tpu_custom_call.1} parent=5 // pred_check_branch
        %415 = sbr.rel (%p413) target = $region64
      $region63: #{tpu_custom_call.1} parent=5 // pred_region
        // Predicated region
        $region65: #{tpu_custom_call.1} parent=63 // pred_check
          %p416 = pneg %p45
        $region66: #{tpu_custom_call.1} parent=63 // pred_check_branch
          %418 = sbr.rel (%p416) target = $region68
        $region67: #{tpu_custom_call.1} parent=63 // pred_region
          %p419 = scmp.lt.s32.totalorder %s25, 1
          %s420 = scalar_select %p419, %s25, 1
          %s421 = smul.addr %s420, 8
          %s422 = scalar_lea.vmem %s0, %s421
        $region68: #{tpu_custom_call.1} parent=63 // pred_fallthru
          _
      $region64: #{tpu_custom_call.1} parent=5 // pred_fallthru
        _
      %p423 = scmp.le.s32.totalorder 1, %s25
      %p424 = scmp.lt.s32.totalorder %s25, 3
      %p425 = pnand %p423, %p424
      %p426 = pneg %p425
      // Predicated region
      $region69: #{tpu_custom_call.1} parent=5 // pred_check
        _
      $region70: #{tpu_custom_call.1} parent=5 // pred_check_branch
        %428 = sbr.rel (%p425) target = $region72
      $region71: #{tpu_custom_call.1} parent=5 // pred_region
        %s429 = ssub.s32 %s25, 1
        // Predicated region
        $region73: #{tpu_custom_call.1} parent=71 // pred_check
          %p430 = pneg %p135
        $region74: #{tpu_custom_call.1} parent=71 // pred_check_branch
          %432 = sbr.rel (%p430) target = $region76
        $region75: #{tpu_custom_call.1} parent=71 // pred_region
          %433 = dma.done [#allocation3], 16
        $region76: #{tpu_custom_call.1} parent=71 // pred_fallthru
          _
        // Predicated region
        $region77: #{tpu_custom_call.1} parent=71 // pred_check
          %p434 = pneg %p177
        $region78: #{tpu_custom_call.1} parent=71 // pred_check_branch
          %436 = sbr.rel (%p434) target = $region80
        $region79: #{tpu_custom_call.1} parent=71 // pred_region
          %437 = dma.done [#allocation6], 16
        $region80: #{tpu_custom_call.1} parent=71 // pred_fallthru
          _
        // Predicated region
        $region81: #{tpu_custom_call.1} parent=71 // pred_check
          %p438 = pneg %p198
        $region82: #{tpu_custom_call.1} parent=71 // pred_check_branch
          %440 = sbr.rel (%p438) target = $region84
        $region83: #{tpu_custom_call.1} parent=71 // pred_region
          %441 = dma.done [#allocation6], 16
        $region84: #{tpu_custom_call.1} parent=71 // pred_fallthru
          _
        // Predicated region
        $region85: #{tpu_custom_call.1} parent=71 // pred_check
          %p442 = pneg %p219
        $region86: #{tpu_custom_call.1} parent=71 // pred_check_branch
          %444 = sbr.rel (%p442) target = $region88
        $region87: #{tpu_custom_call.1} parent=71 // pred_region
          %445 = dma.done [#allocation9], 16
        $region88: #{tpu_custom_call.1} parent=71 // pred_fallthru
          _
        %p446 = scmp.lt.s32.totalorder %s30, 1
        %s447 = scalar_select %p446, %s30, 1
        %s448 = smul.addr %s447, 8
        %s449 = scalar_lea.vmem %s0, %s448
        %p450 = pneg %p51
        %p451 = pneg %p48
        %p452 = pneg %p72
        %p453 = pneg %p69
        %p454 = pneg %p93
        %p455 = pneg %p90
        %p456 = pneg %p114
        %p457 = pneg %p111
        %p458 = pneg %p135
        %p459 = pneg %p132
        %p460 = pneg %p156
        %p461 = pneg %p153
        %p462 = pneg %p177
        %p463 = pneg %p174
        %p464 = pneg %p198
        %p465 = pneg %p195
        %p466 = pneg %p219
        %p467 = pneg %p216
        %p468 = pneg %p240
        %p469 = pneg %p237
        %p470 = pneg %p261
        %p471 = pneg %p258
        %p472 = pneg %p282
        %p473 = pneg %p279
        %p474 = pneg %p303
        %p475 = pneg %p300
        %p476 = pneg %p329
        %p477 = pneg %p326
        %s478 = sand.u32 %s316, 1
        %s479 = scalar_lea.sflag [#allocation4], %s478
        %s480 = sand.u32 %s316, 1
        %s481 = smul.addr %s480, 8
        %s482 = scalar_lea.vmem [#allocation10], %s481
        %p483 = scmp.lt.s32.totalorder %s30, 1
        %s484 = scalar_select %p483, %s30, 1
        %s485 = smul.addr %s484, 8
        %s486 = scalar_lea.vmem %s0, %s485
        %v488 = vld [vmem:[%s486] sm:$0xff]
        %v489 = vld [vmem:[%s1] sm:$0x1]
        %v490 = vld [vmem:[%s2] sm:$0x1]
        %vm491 = vcmask 261120
        %v492 = vsel %vm491, %v488, 0.0
        %493 = vadd.xlane.f32.xlu0 %v492
        %v494 = vpop.xlane.xlu0 %493
        %v495 = vrcp.pop 32.0
        %v496 = vmul.f32 %v494, %v495
        %v497 = vsub.f32 %v488, %v496
        %v498 = vmul.f32 %v497, %v497
        %v499 = vsel %vm491, %v498, 0.0
        %500 = vadd.xlane.f32.xlu0 %v499
        %v501 = vpop.xlane.xlu0 %500
        %v502 = vmul.f32 %v501, %v495
        %v503 = vadd.f32 %v502, 1e-05
        %v504 = vrsqrt.pop %v503
        %v505 = vmul.f32 %v497, %v504
        %v507 = vlaneseq
        %v508 = vshrl.u32 %v507, 7
        %v509 = vsub.s32 0, %v508
        %v510 = vrot.slane %v489, %v509
        %v512 = vmul.f32 %v505, %v510
        %v514 = vlaneseq
        %v515 = vshrl.u32 %v514, 7
        %v516 = vsub.s32 0, %v515
        %v517 = vrot.slane %v490, %v516
        %v519 = vadd.f32 %v512, %v517
        %v520 = vpack.c.bf16 %v519, %v519
        %v521 = vld [vmem:[%s3] sm:$0xf]
        %v522 = vld [vmem:[%s3 + $0x4] sm:$0xf]
        %v523 = vld [vmem:[%s3 + $0x8] sm:$0xf]
        %v524 = vld [vmem:[%s3 + $0xc] sm:$0xf]
        %v525 = vld [vmem:[#allocation2] sm:$0x1]
        %v527 = vlaneseq
        %v528 = vshrl.u32 %v527, 7
        %v529 = vsub.s32 0, %v528
        %v530 = vrot.slane %v525, %v529
        %v536 = vunpack.c.l.b16 %v521
        %v537 = vunpack.c.l.b16 %v522
        %v538 = vunpack.c.l.b16 %v523
        %v539 = vunpack.c.l.b16 %v524
        %v540 = vpack.c.b16 %v537, %v536
        %v541 = vpack.c.b16 %v539, %v538
        %v545 = vsel %vm491, %v520, 0
        %547 = vmatprep.subr.bf16.mxu0 0
        %548 = vmatpush1.bf16.msra.mxu0 %v540
        %549 = vmatprep.subr.bf16.mxu0 0
        %550 = vmatpush1.bf16.msra.mxu0 %v541
        %551 = vmatprep.subr.bf16.mxu0 0
        %552 = vmatpush1.bf16.msra.mxu0 0
        %553 = vmatprep.subr.bf16.mxu0 0
        %554 = vmatpush1.bf16.msra.mxu0 0
        %555 = vmatprep.subr.bf16.mxu0 0
        %556 = vmatpush1.bf16.msra.mxu0 0
        %557 = vmatprep.subr.bf16.mxu0 0
        %558 = vmatpush1.bf16.msra.mxu0 0
        %559 = vmatprep.subr.bf16.mxu0 0
        %560 = vmatpush1.bf16.msra.mxu0 0
        %561 = vmatprep.subr.bf16.mxu0 0
        %562 = vmatpush1.bf16.msra.mxu0 0
        %563 = vmatprep.subr.bf16.mxu0 0
        %564 = vmatpush1.bf16.msra.mxu0 0
        %565 = vmatprep.subr.bf16.mxu0 0
        %566 = vmatpush1.bf16.msra.mxu0 0
        %567 = vmatprep.subr.bf16.mxu0 0
        %568 = vmatpush1.bf16.msra.mxu0 0
        %569 = vmatprep.subr.bf16.mxu0 0
        %570 = vmatpush1.bf16.msra.mxu0 0
        %571 = vmatprep.subr.bf16.mxu0 0
        %572 = vmatpush1.bf16.msra.mxu0 0
        %573 = vmatprep.subr.bf16.mxu0 0
        %574 = vmatpush1.bf16.msra.mxu0 0
        %575 = vmatprep.subr.bf16.mxu0 0
        %576 = vmatpush1.bf16.msra.mxu0 0
        %577 = vmatprep.subr.bf16.mxu0 0
        %578 = vmatpush1.bf16.msra.mxu0 0
        %579 = vmatprep.mubr.bf16.mxu0 0
        %580 = vmatmul.mubr.bf16.gmra.mrb[0].mxu0 %v545
        %v581 = vpop.f32.mrb[0].mxu0
        %v582 = vadd.f32 %v530, %v581
        %v583 = vpop.f32.mrb[0].mxu0
        %v584 = vpop.f32.mrb[0].mxu0
        %v585 = vpop.f32.mrb[0].mxu0
        %586 = vdwg.mxu0
        %v587 = vpack.c.bf16 %v582, %v582
        %589 = vrot.lane.b32.xlu0 %v587, 96
        %v590 = vpop.permute.xlu0 %589
        %vm591 = vcmask 64512
        %v593 = vsel %vm591, %v587, 0
        %v596 = vsel %vm591, %v590, 0
        %598 = vmatprep.subr.bf16.mxu0 0
        %599 = vmatpush1.bf16.xpose.msra.mxu0 %v596
        %600 = vmatprep.subr.bf16.mxu0 0
        %601 = vmatpush1.bf16.xpose.msra.mxu0 0
        %602 = vmatprep.subr.bf16.mxu0 0
        %603 = vmatpush1.bf16.xpose.msra.mxu0 0
        %604 = vmatprep.subr.bf16.mxu0 0
        %605 = vmatpush1.bf16.xpose.msra.mxu0 0
        %606 = vmatprep.subr.bf16.mxu0 0
        %607 = vmatpush1.bf16.xpose.msra.mxu0 0
        %608 = vmatprep.subr.bf16.mxu0 0
        %609 = vmatpush1.bf16.xpose.msra.mxu0 0
        %610 = vmatprep.subr.bf16.mxu0 0
        %611 = vmatpush1.bf16.xpose.msra.mxu0 0
        %612 = vmatprep.subr.bf16.mxu0 0
        %613 = vmatpush1.bf16.xpose.msra.mxu0 0
        %614 = vmatprep.subr.bf16.mxu0 0
        %615 = vmatpush1.bf16.xpose.msra.mxu0 0
        %616 = vmatprep.subr.bf16.mxu0 0
        %617 = vmatpush1.bf16.xpose.msra.mxu0 0
        %618 = vmatprep.subr.bf16.mxu0 0
        %619 = vmatpush1.bf16.xpose.msra.mxu0 0
        %620 = vmatprep.subr.bf16.mxu0 0
        %621 = vmatpush1.bf16.xpose.msra.mxu0 0
        %622 = vmatprep.subr.bf16.mxu0 0
        %623 = vmatpush1.bf16.xpose.msra.mxu0 0
        %624 = vmatprep.subr.bf16.mxu0 0
        %625 = vmatpush1.bf16.xpose.msra.mxu0 0
        %626 = vmatprep.subr.bf16.mxu0 0
        %627 = vmatpush1.bf16.xpose.msra.mxu0 0
        %628 = vmatprep.subr.bf16.mxu0 0
        %629 = vmatpush1.bf16.xpose.msra.mxu0 0
        %630 = vmatprep.mubr.bf16.mxu0 0
        %631 = vmatmul.mubr.bf16.gmra.mrb[0].mxu0 %v593
        %v632 = vpop.f32.mrb[0].mxu0
        %v633 = vadd.f32 0.0, %v632
        %v634 = vpop.f32.mrb[0].mxu0
        %v635 = vpop.f32.mrb[0].mxu0
        %v636 = vpop.f32.mrb[0].mxu0
        %637 = vdwg.mxu0
        %v638 = vsel %vm591, %v633, -inf
        %639 = vmax.xlane.f32.xlu0 %v638
        %v640 = vpop.xlane.xlu0 %639
        %v641 = vsub.f32 %v633, %v640
        %v642 = vmul.f32 %v641, 1.442695
        %v643 = vpow.pop %v642
        %v644 = vsel %vm591, %v643, 0.0
        %645 = vadd.xlane.f32.xlu0 %v644
        %v646 = vpop.xlane.xlu0 %645
        %v647 = vrcp.pop %v646
        %v648 = vmul.f32 %v643, %v647
        %v649 = vpack.c.bf16 %v648, %v648
        %650 = vrot.lane.b32.xlu0 %v587, 64
        %v651 = vpop.permute.xlu0 %650
        %v653 = vsel %vm591, %v649, 0
        %vm655 = vcmask 1043456
        %v657 = vsel %vm655, %v651, 0
        %659 = vmatprep.subr.bf16.mxu0 0
        %660 = vmatpush1.bf16.msra.mxu0 %v657
        %661 = vmatprep.subr.bf16.mxu0 0
        %662 = vmatpush1.bf16.msra.mxu0 0
        %663 = vmatprep.subr.bf16.mxu0 0
        %664 = vmatpush1.bf16.msra.mxu0 0
        %665 = vmatprep.subr.bf16.mxu0 0
        %666 = vmatpush1.bf16.msra.mxu0 0
        %667 = vmatprep.subr.bf16.mxu0 0
        %668 = vmatpush1.bf16.msra.mxu0 0
        %669 = vmatprep.subr.bf16.mxu0 0
        %670 = vmatpush1.bf16.msra.mxu0 0
        %671 = vmatprep.subr.bf16.mxu0 0
        %672 = vmatpush1.bf16.msra.mxu0 0
        %673 = vmatprep.subr.bf16.mxu0 0
        %674 = vmatpush1.bf16.msra.mxu0 0
        %675 = vmatprep.subr.bf16.mxu0 0
        %676 = vmatpush1.bf16.msra.mxu0 0
        %677 = vmatprep.subr.bf16.mxu0 0
        %678 = vmatpush1.bf16.msra.mxu0 0
        %679 = vmatprep.subr.bf16.mxu0 0
        %680 = vmatpush1.bf16.msra.mxu0 0
        %681 = vmatprep.subr.bf16.mxu0 0
        %682 = vmatpush1.bf16.msra.mxu0 0
        %683 = vmatprep.subr.bf16.mxu0 0
        %684 = vmatpush1.bf16.msra.mxu0 0
        %685 = vmatprep.subr.bf16.mxu0 0
        %686 = vmatpush1.bf16.msra.mxu0 0
        %687 = vmatprep.subr.bf16.mxu0 0
        %688 = vmatpush1.bf16.msra.mxu0 0
        %689 = vmatprep.subr.bf16.mxu0 0
        %690 = vmatpush1.bf16.msra.mxu0 0
        %691 = vmatprep.mubr.bf16.mxu0 0
        %692 = vmatmul.mubr.bf16.gmra.mrb[0].mxu0 %v653
        %v693 = vpop.f32.mrb[0].mxu0
        %v694 = vadd.f32 0.0, %v693
        %v695 = vpop.f32.mrb[0].mxu0
        %v696 = vpop.f32.mrb[0].mxu0
        %v697 = vpop.f32.mrb[0].mxu0
        %698 = vdwg.mxu0
        %v699 = vpack.c.bf16 %v694, %v694
        %v700 = vld [vmem:[%s5] sm:$0xf]
        %701 = vrot.lane.b32.xlu0 %v587, 120
        %v702 = vpop.permute.xlu0 %701
        %703 = vrot.lane.b32.xlu0 %v587, 88
        %v704 = vpop.permute.xlu0 %703
        %v706 = vsel %vm591, %v702, 0
        %v709 = vsel %vm591, %v704, 0
        %711 = vmatprep.subr.bf16.mxu0 0
        %712 = vmatpush1.bf16.xpose.msra.mxu0 %v709
        %713 = vmatprep.subr.bf16.mxu0 0
        %714 = vmatpush1.bf16.xpose.msra.mxu0 0
        %715 = vmatprep.subr.bf16.mxu0 0
        %716 = vmatpush1.bf16.xpose.msra.mxu0 0
        %717 = vmatprep.subr.bf16.mxu0 0
        %718 = vmatpush1.bf16.xpose.msra.mxu0 0
        %719 = vmatprep.subr.bf16.mxu0 0
        %720 = vmatpush1.bf16.xpose.msra.mxu0 0
        %721 = vmatprep.subr.bf16.mxu0 0
        %722 = vmatpush1.bf16.xpose.msra.mxu0 0
        %723 = vmatprep.subr.bf16.mxu0 0
        %724 = vmatpush1.bf16.xpose.msra.mxu0 0
        %725 = vmatprep.subr.bf16.mxu0 0
        %726 = vmatpush1.bf16.xpose.msra.mxu0 0
        %727 = vmatprep.subr.bf16.mxu0 0
        %728 = vmatpush1.bf16.xpose.msra.mxu0 0
        %729 = vmatprep.subr.bf16.mxu0 0
        %730 = vmatpush1.bf16.xpose.msra.mxu0 0
        %731 = vmatprep.subr.bf16.mxu0 0
        %732 = vmatpush1.bf16.xpose.msra.mxu0 0
        %733 = vmatprep.subr.bf16.mxu0 0
        %734 = vmatpush1.bf16.xpose.msra.mxu0 0
        %735 = vmatprep.subr.bf16.mxu0 0
        %736 = vmatpush1.bf16.xpose.msra.mxu0 0
        %737 = vmatprep.subr.bf16.mxu0 0
        %738 = vmatpush1.bf16.xpose.msra.mxu0 0
        %739 = vmatprep.subr.bf16.mxu0 0
        %740 = vmatpush1.bf16.xpose.msra.mxu0 0
        %741 = vmatprep.subr.bf16.mxu0 0
        %742 = vmatpush1.bf16.xpose.msra.mxu0 0
        %743 = vmatprep.mubr.bf16.mxu0 0
        %744 = vmatmul.mubr.bf16.gmra.mrb[0].mxu0 %v706
        %v745 = vpop.f32.mrb[0].mxu0
        %v746 = vadd.f32 0.0, %v745
        %v747 = vpop.f32.mrb[0].mxu0
        %v748 = vpop.f32.mrb[0].mxu0
        %v749 = vpop.f32.mrb[0].mxu0
        %750 = vdwg.mxu0
        %v751 = vsel %vm591, %v746, -inf
        %752 = vmax.xlane.f32.xlu0 %v751
        %v753 = vpop.xlane.xlu0 %752
        %v754 = vsub.f32 %v746, %v753
        %v755 = vmul.f32 %v754, 1.442695
        %v756 = vpow.pop %v755
        %v757 = vsel %vm591, %v756, 0.0
        %758 = vadd.xlane.f32.xlu0 %v757
        %v759 = vpop.xlane.xlu0 %758
        %v760 = vrcp.pop %v759
        %v761 = vmul.f32 %v756, %v760
        %v762 = vpack.c.bf16 %v761, %v761
        %763 = vrot.lane.b32.xlu0 %v587, 56
        %v764 = vpop.permute.xlu0 %763
        %v766 = vsel %vm591, %v762, 0
        %v769 = vsel %vm655, %v764, 0
        %771 = vmatprep.subr.bf16.mxu0 0
        %772 = vmatpush1.bf16.msra.mxu0 %v769
        %773 = vmatprep.subr.bf16.mxu0 0
        %774 = vmatpush1.bf16.msra.mxu0 0
        %775 = vmatprep.subr.bf16.mxu0 0
        %776 = vmatpush1.bf16.msra.mxu0 0
        %777 = vmatprep.subr.bf16.mxu0 0
        %778 = vmatpush1.bf16.msra.mxu0 0
        %779 = vmatprep.subr.bf16.mxu0 0
        %780 = vmatpush1.bf16.msra.mxu0 0
        %781 = vmatprep.subr.bf16.mxu0 0
        %782 = vmatpush1.bf16.msra.mxu0 0
        %783 = vmatprep.subr.bf16.mxu0 0
        %784 = vmatpush1.bf16.msra.mxu0 0
        %785 = vmatprep.subr.bf16.mxu0 0
        %786 = vmatpush1.bf16.msra.mxu0 0
        %787 = vmatprep.subr.bf16.mxu0 0
        %788 = vmatpush1.bf16.msra.mxu0 0
        %789 = vmatprep.subr.bf16.mxu0 0
        %790 = vmatpush1.bf16.msra.mxu0 0
        %791 = vmatprep.subr.bf16.mxu0 0
        %792 = vmatpush1.bf16.msra.mxu0 0
        %793 = vmatprep.subr.bf16.mxu0 0
        %794 = vmatpush1.bf16.msra.mxu0 0
        %795 = vmatprep.subr.bf16.mxu0 0
        %796 = vmatpush1.bf16.msra.mxu0 0
        %797 = vmatprep.subr.bf16.mxu0 0
        %798 = vmatpush1.bf16.msra.mxu0 0
        %799 = vmatprep.subr.bf16.mxu0 0
        %800 = vmatpush1.bf16.msra.mxu0 0
        %801 = vmatprep.subr.bf16.mxu0 0
        %802 = vmatpush1.bf16.msra.mxu0 0
        %803 = vmatprep.mubr.bf16.mxu0 0
        %804 = vmatmul.mubr.bf16.gmra.mrb[0].mxu0 %v766
        %v805 = vpop.f32.mrb[0].mxu0
        %v806 = vadd.f32 0.0, %v805
        %v807 = vpop.f32.mrb[0].mxu0
        %v808 = vpop.f32.mrb[0].mxu0
        %v809 = vpop.f32.mrb[0].mxu0
        %810 = vdwg.mxu0
        %v811 = vpack.c.bf16 %v806, %v806
        %v812 = vld [vmem:[%s5 + $0x4] sm:$0xf]
        %v814 = vsel %vm591, %v811, 0
        %v817 = vsel %vm655, %v812, 0
        %819 = vmatprep.subr.bf16.mxu0 0
        %820 = vmatpush1.bf16.msra.mxu0 %v817
        %821 = vmatprep.subr.bf16.mxu0 0
        %822 = vmatpush1.bf16.msra.mxu0 0
        %823 = vmatprep.subr.bf16.mxu0 0
        %824 = vmatpush1.bf16.msra.mxu0 0
        %825 = vmatprep.subr.bf16.mxu0 0
        %826 = vmatpush1.bf16.msra.mxu0 0
        %827 = vmatprep.subr.bf16.mxu0 0
        %828 = vmatpush1.bf16.msra.mxu0 0
        %829 = vmatprep.subr.bf16.mxu0 0
        %830 = vmatpush1.bf16.msra.mxu0 0
        %831 = vmatprep.subr.bf16.mxu0 0
        %832 = vmatpush1.bf16.msra.mxu0 0
        %833 = vmatprep.subr.bf16.mxu0 0
        %834 = vmatpush1.bf16.msra.mxu0 0
        %835 = vmatprep.subr.bf16.mxu0 0
        %836 = vmatpush1.bf16.msra.mxu0 0
        %837 = vmatprep.subr.bf16.mxu0 0
        %838 = vmatpush1.bf16.msra.mxu0 0
        %839 = vmatprep.subr.bf16.mxu0 0
        %840 = vmatpush1.bf16.msra.mxu0 0
        %841 = vmatprep.subr.bf16.mxu0 0
        %842 = vmatpush1.bf16.msra.mxu0 0
        %843 = vmatprep.subr.bf16.mxu0 0
        %844 = vmatpush1.bf16.msra.mxu0 0
        %845 = vmatprep.subr.bf16.mxu0 0
        %846 = vmatpush1.bf16.msra.mxu0 0
        %847 = vmatprep.subr.bf16.mxu0 0
        %848 = vmatpush1.bf16.msra.mxu0 0
        %849 = vmatprep.subr.bf16.mxu0 0
        %850 = vmatpush1.bf16.msra.mxu0 0
        %851 = vmatprep.mubr.bf16.mxu0 0
        %852 = vmatmul.mubr.bf16.gmra.mrb[0].mxu0 %v814
        %v853 = vpop.f32.mrb[0].mxu0
        %v854 = vadd.f32 0.0, %v853
        %v855 = vpop.f32.mrb[0].mxu0
        %v856 = vpop.f32.mrb[0].mxu0
        %v857 = vpop.f32.mrb[0].mxu0
        %858 = vdwg.mxu0
        %v860 = vsel %vm591, %v699, 0
        %v863 = vsel %vm655, %v700, 0
        %865 = vmatprep.subr.bf16.mxu0 0
        %866 = vmatpush1.bf16.msra.mxu0 %v863
        %867 = vmatprep.subr.bf16.mxu0 0
        %868 = vmatpush1.bf16.msra.mxu0 0
        %869 = vmatprep.subr.bf16.mxu0 0
        %870 = vmatpush1.bf16.msra.mxu0 0
        %871 = vmatprep.subr.bf16.mxu0 0
        %872 = vmatpush1.bf16.msra.mxu0 0
        %873 = vmatprep.subr.bf16.mxu0 0
        %874 = vmatpush1.bf16.msra.mxu0 0
        %875 = vmatprep.subr.bf16.mxu0 0
        %876 = vmatpush1.bf16.msra.mxu0 0
        %877 = vmatprep.subr.bf16.mxu0 0
        %878 = vmatpush1.bf16.msra.mxu0 0
        %879 = vmatprep.subr.bf16.mxu0 0
        %880 = vmatpush1.bf16.msra.mxu0 0
        %881 = vmatprep.subr.bf16.mxu0 0
        %882 = vmatpush1.bf16.msra.mxu0 0
        %883 = vmatprep.subr.bf16.mxu0 0
        %884 = vmatpush1.bf16.msra.mxu0 0
        %885 = vmatprep.subr.bf16.mxu0 0
        %886 = vmatpush1.bf16.msra.mxu0 0
        %887 = vmatprep.subr.bf16.mxu0 0
        %888 = vmatpush1.bf16.msra.mxu0 0
        %889 = vmatprep.subr.bf16.mxu0 0
        %890 = vmatpush1.bf16.msra.mxu0 0
        %891 = vmatprep.subr.bf16.mxu0 0
        %892 = vmatpush1.bf16.msra.mxu0 0
        %893 = vmatprep.subr.bf16.mxu0 0
        %894 = vmatpush1.bf16.msra.mxu0 0
        %895 = vmatprep.subr.bf16.mxu0 0
        %896 = vmatpush1.bf16.msra.mxu0 0
        %897 = vmatprep.mubr.bf16.mxu0 0
        %898 = vmatmul.mubr.bf16.gmra.mrb[0].mxu0 %v860
        %v899 = vpop.f32.mrb[0].mxu0
        %v900 = vadd.f32 %v854, %v899
        %v901 = vpop.f32.mrb[0].mxu0
        %v902 = vpop.f32.mrb[0].mxu0
        %v903 = vpop.f32.mrb[0].mxu0
        %904 = vdwg.mxu0
        %905 = vrot.lane.b32.xlu0 %v587, 112
        %v906 = vpop.permute.xlu0 %905
        %907 = vrot.lane.b32.xlu0 %v587, 80
        %v908 = vpop.permute.xlu0 %907
        %v910 = vsel %vm591, %v906, 0
        %v913 = vsel %vm591, %v908, 0
        %915 = vmatprep.subr.bf16.mxu0 0
        %916 = vmatpush1.bf16.xpose.msra.mxu0 %v913
        %917 = vmatprep.subr.bf16.mxu0 0
        %918 = vmatpush1.bf16.xpose.msra.mxu0 0
        %919 = vmatprep.subr.bf16.mxu0 0
        %920 = vmatpush1.bf16.xpose.msra.mxu0 0
        %921 = vmatprep.subr.bf16.mxu0 0
        %922 = vmatpush1.bf16.xpose.msra.mxu0 0
        %923 = vmatprep.subr.bf16.mxu0 0
        %924 = vmatpush1.bf16.xpose.msra.mxu0 0
        %925 = vmatprep.subr.bf16.mxu0 0
        %926 = vmatpush1.bf16.xpose.msra.mxu0 0
        %927 = vmatprep.subr.bf16.mxu0 0
        %928 = vmatpush1.bf16.xpose.msra.mxu0 0
        %929 = vmatprep.subr.bf16.mxu0 0
        %930 = vmatpush1.bf16.xpose.msra.mxu0 0
        %931 = vmatprep.subr.bf16.mxu0 0
        %932 = vmatpush1.bf16.xpose.msra.mxu0 0
        %933 = vmatprep.subr.bf16.mxu0 0
        %934 = vmatpush1.bf16.xpose.msra.mxu0 0
        %935 = vmatprep.subr.bf16.mxu0 0
        %936 = vmatpush1.bf16.xpose.msra.mxu0 0
        %937 = vmatprep.subr.bf16.mxu0 0
        %938 = vmatpush1.bf16.xpose.msra.mxu0 0
        %939 = vmatprep.subr.bf16.mxu0 0
        %940 = vmatpush1.bf16.xpose.msra.mxu0 0
        %941 = vmatprep.subr.bf16.mxu0 0
        %942 = vmatpush1.bf16.xpose.msra.mxu0 0
        %943 = vmatprep.subr.bf16.mxu0 0
        %944 = vmatpush1.bf16.xpose.msra.mxu0 0
        %945 = vmatprep.subr.bf16.mxu0 0
        %946 = vmatpush1.bf16.xpose.msra.mxu0 0
        %947 = vmatprep.mubr.bf16.mxu0 0
        %948 = vmatmul.mubr.bf16.gmra.mrb[0].mxu0 %v910
        %v949 = vpop.f32.mrb[0].mxu0
        %v950 = vadd.f32 0.0, %v949
        %v951 = vpop.f32.mrb[0].mxu0
        %v952 = vpop.f32.mrb[0].mxu0
        %v953 = vpop.f32.mrb[0].mxu0
        %954 = vdwg.mxu0
        %v955 = vsel %vm591, %v950, -inf
        %956 = vmax.xlane.f32.xlu0 %v955
        %v957 = vpop.xlane.xlu0 %956
        %v958 = vsub.f32 %v950, %v957
        %v959 = vmul.f32 %v958, 1.442695
        %v960 = vpow.pop %v959
        %v961 = vsel %vm591, %v960, 0.0
        %962 = vadd.xlane.f32.xlu0 %v961
        %v963 = vpop.xlane.xlu0 %962
        %v964 = vrcp.pop %v963
        %v965 = vmul.f32 %v960, %v964
        %v966 = vpack.c.bf16 %v965, %v965
        %967 = vrot.lane.b32.xlu0 %v587, 48
        %v968 = vpop.permute.xlu0 %967
        %v970 = vsel %vm591, %v966, 0
        %v973 = vsel %vm655, %v968, 0
        %975 = vmatprep.subr.bf16.mxu0 0
        %976 = vmatpush1.bf16.msra.mxu0 %v973
        %977 = vmatprep.subr.bf16.mxu0 0
        %978 = vmatpush1.bf16.msra.mxu0 0
        %979 = vmatprep.subr.bf16.mxu0 0
        %980 = vmatpush1.bf16.msra.mxu0 0
        %981 = vmatprep.subr.bf16.mxu0 0
        %982 = vmatpush1.bf16.msra.mxu0 0
        %983 = vmatprep.subr.bf16.mxu0 0
        %984 = vmatpush1.bf16.msra.mxu0 0
        %985 = vmatprep.subr.bf16.mxu0 0
        %986 = vmatpush1.bf16.msra.mxu0 0
        %987 = vmatprep.subr.bf16.mxu0 0
        %988 = vmatpush1.bf16.msra.mxu0 0
        %989 = vmatprep.subr.bf16.mxu0 0
        %990 = vmatpush1.bf16.msra.mxu0 0
        %991 = vmatprep.subr.bf16.mxu0 0
        %992 = vmatpush1.bf16.msra.mxu0 0
        %993 = vmatprep.subr.bf16.mxu0 0
        %994 = vmatpush1.bf16.msra.mxu0 0
        %995 = vmatprep.subr.bf16.mxu0 0
        %996 = vmatpush1.bf16.msra.mxu0 0
        %997 = vmatprep.subr.bf16.mxu0 0
        %998 = vmatpush1.bf16.msra.mxu0 0
        %999 = vmatprep.subr.bf16.mxu0 0
        %1000 = vmatpush1.bf16.msra.mxu0 0
        %1001 = vmatprep.subr.bf16.mxu0 0
        %1002 = vmatpush1.bf16.msra.mxu0 0
        %1003 = vmatprep.subr.bf16.mxu0 0
        %1004 = vmatpush1.bf16.msra.mxu0 0
        %1005 = vmatprep.subr.bf16.mxu0 0
        %1006 = vmatpush1.bf16.msra.mxu0 0
        %1007 = vmatprep.mubr.bf16.mxu0 0
        %1008 = vmatmul.mubr.bf16.gmra.mrb[0].mxu0 %v970
        %v1009 = vpop.f32.mrb[0].mxu0
        %v1010 = vadd.f32 0.0, %v1009
        %v1011 = vpop.f32.mrb[0].mxu0
        %v1012 = vpop.f32.mrb[0].mxu0
        %v1013 = vpop.f32.mrb[0].mxu0
        %1014 = vdwg.mxu0
        %v1015 = vpack.c.bf16 %v1010, %v1010
        %v1016 = vld [vmem:[%s5 + $0x8] sm:$0xf]
        %v1018 = vsel %vm591, %v1015, 0
        %v1021 = vsel %vm655, %v1016, 0
        %1023 = vmatprep.subr.bf16.mxu0 0
        %1024 = vmatpush1.bf16.msra.mxu0 %v1021
        %1025 = vmatprep.subr.bf16.mxu0 0
        %1026 = vmatpush1.bf16.msra.mxu0 0
        %1027 = vmatprep.subr.bf16.mxu0 0
        %1028 = vmatpush1.bf16.msra.mxu0 0
        %1029 = vmatprep.subr.bf16.mxu0 0
        %1030 = vmatpush1.bf16.msra.mxu0 0
        %1031 = vmatprep.subr.bf16.mxu0 0
        %1032 = vmatpush1.bf16.msra.mxu0 0
        %1033 = vmatprep.subr.bf16.mxu0 0
        %1034 = vmatpush1.bf16.msra.mxu0 0
        %1035 = vmatprep.subr.bf16.mxu0 0
        %1036 = vmatpush1.bf16.msra.mxu0 0
        %1037 = vmatprep.subr.bf16.mxu0 0
        %1038 = vmatpush1.bf16.msra.mxu0 0
        %1039 = vmatprep.subr.bf16.mxu0 0
        %1040 = vmatpush1.bf16.msra.mxu0 0
        %1041 = vmatprep.subr.bf16.mxu0 0
        %1042 = vmatpush1.bf16.msra.mxu0 0
        %1043 = vmatprep.subr.bf16.mxu0 0
        %1044 = vmatpush1.bf16.msra.mxu0 0
        %1045 = vmatprep.subr.bf16.mxu0 0
        %1046 = vmatpush1.bf16.msra.mxu0 0
        %1047 = vmatprep.subr.bf16.mxu0 0
        %1048 = vmatpush1.bf16.msra.mxu0 0
        %1049 = vmatprep.subr.bf16.mxu0 0
        %1050 = vmatpush1.bf16.msra.mxu0 0
        %1051 = vmatprep.subr.bf16.mxu0 0
        %1052 = vmatpush1.bf16.msra.mxu0 0
        %1053 = vmatprep.subr.bf16.mxu0 0
        %1054 = vmatpush1.bf16.msra.mxu0 0
        %1055 = vmatprep.mubr.bf16.mxu0 0
        %1056 = vmatmul.mubr.bf16.gmra.mrb[0].mxu0 %v1018
        %v1057 = vpop.f32.mrb[0].mxu0
        %v1058 = vadd.f32 0.0, %v1057
        %v1059 = vpop.f32.mrb[0].mxu0
        %v1060 = vpop.f32.mrb[0].mxu0
        %v1061 = vpop.f32.mrb[0].mxu0
        %1062 = vdwg.mxu0
        %v1063 = vadd.f32 %v900, %v1058
        %1064 = vrot.lane.b32.xlu0 %v587, 104
        %v1065 = vpop.permute.xlu0 %1064
        %1066 = vrot.lane.b32.xlu0 %v587, 72
        %v1067 = vpop.permute.xlu0 %1066
        %v1069 = vsel %vm591, %v1065, 0
        %v1072 = vsel %vm591, %v1067, 0
        %1074 = vmatprep.subr.bf16.mxu0 0
        %1075 = vmatpush1.bf16.xpose.msra.mxu0 %v1072
        %1076 = vmatprep.subr.bf16.mxu0 0
        %1077 = vmatpush1.bf16.xpose.msra.mxu0 0
        %1078 = vmatprep.subr.bf16.mxu0 0
        %1079 = vmatpush1.bf16.xpose.msra.mxu0 0
        %1080 = vmatprep.subr.bf16.mxu0 0
        %1081 = vmatpush1.bf16.xpose.msra.mxu0 0
        %1082 = vmatprep.subr.bf16.mxu0 0
        %1083 = vmatpush1.bf16.xpose.msra.mxu0 0
        %1084 = vmatprep.subr.bf16.mxu0 0
        %1085 = vmatpush1.bf16.xpose.msra.mxu0 0
        %1086 = vmatprep.subr.bf16.mxu0 0
        %1087 = vmatpush1.bf16.xpose.msra.mxu0 0
        %1088 = vmatprep.subr.bf16.mxu0 0
        %1089 = vmatpush1.bf16.xpose.msra.mxu0 0
        %1090 = vmatprep.subr.bf16.mxu0 0
        %1091 = vmatpush1.bf16.xpose.msra.mxu0 0
        %1092 = vmatprep.subr.bf16.mxu0 0
        %1093 = vmatpush1.bf16.xpose.msra.mxu0 0
        %1094 = vmatprep.subr.bf16.mxu0 0
        %1095 = vmatpush1.bf16.xpose.msra.mxu0 0
        %1096 = vmatprep.subr.bf16.mxu0 0
        %1097 = vmatpush1.bf16.xpose.msra.mxu0 0
        %1098 = vmatprep.subr.bf16.mxu0 0
        %1099 = vmatpush1.bf16.xpose.msra.mxu0 0
        %1100 = vmatprep.subr.bf16.mxu0 0
        %1101 = vmatpush1.bf16.xpose.msra.mxu0 0
        %1102 = vmatprep.subr.bf16.mxu0 0
        %1103 = vmatpush1.bf16.xpose.msra.mxu0 0
        %1104 = vmatprep.subr.bf16.mxu0 0
        %1105 = vmatpush1.bf16.xpose.msra.mxu0 0
        %1106 = vmatprep.mubr.bf16.mxu0 0
        %1107 = vmatmul.mubr.bf16.gmra.mrb[0].mxu0 %v1069
        %v1108 = vpop.f32.mrb[0].mxu0
        %v1109 = vadd.f32 0.0, %v1108
        %v1110 = vpop.f32.mrb[0].mxu0
        %v1111 = vpop.f32.mrb[0].mxu0
        %v1112 = vpop.f32.mrb[0].mxu0
        %1113 = vdwg.mxu0
        %v1114 = vsel %vm591, %v1109, -inf
        %1115 = vmax.xlane.f32.xlu0 %v1114
        %v1116 = vpop.xlane.xlu0 %1115
        %v1117 = vsub.f32 %v1109, %v1116
        %v1118 = vmul.f32 %v1117, 1.442695
        %v1119 = vpow.pop %v1118
        %v1120 = vsel %vm591, %v1119, 0.0
        %1121 = vadd.xlane.f32.xlu0 %v1120
        %v1122 = vpop.xlane.xlu0 %1121
        %v1123 = vrcp.pop %v1122
        %v1124 = vmul.f32 %v1119, %v1123
        %v1125 = vpack.c.bf16 %v1124, %v1124
        %1126 = vrot.lane.b32.xlu0 %v587, 40
        %v1127 = vpop.permute.xlu0 %1126
        %v1129 = vsel %vm591, %v1125, 0
        %v1132 = vsel %vm655, %v1127, 0
        %1134 = vmatprep.subr.bf16.mxu0 0
        %1135 = vmatpush1.bf16.msra.mxu0 %v1132
        %1136 = vmatprep.subr.bf16.mxu0 0
        %1137 = vmatpush1.bf16.msra.mxu0 0
        %1138 = vmatprep.subr.bf16.mxu0 0
        %1139 = vmatpush1.bf16.msra.mxu0 0
        %1140 = vmatprep.subr.bf16.mxu0 0
        %1141 = vmatpush1.bf16.msra.mxu0 0
        %1142 = vmatprep.subr.bf16.mxu0 0
        %1143 = vmatpush1.bf16.msra.mxu0 0
        %1144 = vmatprep.subr.bf16.mxu0 0
        %1145 = vmatpush1.bf16.msra.mxu0 0
        %1146 = vmatprep.subr.bf16.mxu0 0
        %1147 = vmatpush1.bf16.msra.mxu0 0
        %1148 = vmatprep.subr.bf16.mxu0 0
        %1149 = vmatpush1.bf16.msra.mxu0 0
        %1150 = vmatprep.subr.bf16.mxu0 0
        %1151 = vmatpush1.bf16.msra.mxu0 0
        %1152 = vmatprep.subr.bf16.mxu0 0
        %1153 = vmatpush1.bf16.msra.mxu0 0
        %1154 = vmatprep.subr.bf16.mxu0 0
        %1155 = vmatpush1.bf16.msra.mxu0 0
        %1156 = vmatprep.subr.bf16.mxu0 0
        %1157 = vmatpush1.bf16.msra.mxu0 0
        %1158 = vmatprep.subr.bf16.mxu0 0
        %1159 = vmatpush1.bf16.msra.mxu0 0
        %1160 = vmatprep.subr.bf16.mxu0 0
        %1161 = vmatpush1.bf16.msra.mxu0 0
        %1162 = vmatprep.subr.bf16.mxu0 0
        %1163 = vmatpush1.bf16.msra.mxu0 0
        %1164 = vmatprep.subr.bf16.mxu0 0
        %1165 = vmatpush1.bf16.msra.mxu0 0
        %1166 = vmatprep.mubr.bf16.mxu0 0
        %1167 = vmatmul.mubr.bf16.gmra.mrb[0].mxu0 %v1129
        %v1168 = vpop.f32.mrb[0].mxu0
        %v1169 = vadd.f32 0.0, %v1168
        %v1170 = vpop.f32.mrb[0].mxu0
        %v1171 = vpop.f32.mrb[0].mxu0
        %v1172 = vpop.f32.mrb[0].mxu0
        %1173 = vdwg.mxu0
        %v1174 = vpack.c.bf16 %v1169, %v1169
        %v1175 = vld [vmem:[%s5 + $0xc] sm:$0xf]
        %v1177 = vsel %vm591, %v1174, 0
        %v1180 = vsel %vm655, %v1175, 0
        %1182 = vmatprep.subr.bf16.mxu0 0
        %1183 = vmatpush1.bf16.msra.mxu0 %v1180
        %1184 = vmatprep.subr.bf16.mxu0 0
        %1185 = vmatpush1.bf16.msra.mxu0 0
        %1186 = vmatprep.subr.bf16.mxu0 0
        %1187 = vmatpush1.bf16.msra.mxu0 0
        %1188 = vmatprep.subr.bf16.mxu0 0
        %1189 = vmatpush1.bf16.msra.mxu0 0
        %1190 = vmatprep.subr.bf16.mxu0 0
        %1191 = vmatpush1.bf16.msra.mxu0 0
        %1192 = vmatprep.subr.bf16.mxu0 0
        %1193 = vmatpush1.bf16.msra.mxu0 0
        %1194 = vmatprep.subr.bf16.mxu0 0
        %1195 = vmatpush1.bf16.msra.mxu0 0
        %1196 = vmatprep.subr.bf16.mxu0 0
        %1197 = vmatpush1.bf16.msra.mxu0 0
        %1198 = vmatprep.subr.bf16.mxu0 0
        %1199 = vmatpush1.bf16.msra.mxu0 0
        %1200 = vmatprep.subr.bf16.mxu0 0
        %1201 = vmatpush1.bf16.msra.mxu0 0
        %1202 = vmatprep.subr.bf16.mxu0 0
        %1203 = vmatpush1.bf16.msra.mxu0 0
        %1204 = vmatprep.subr.bf16.mxu0 0
        %1205 = vmatpush1.bf16.msra.mxu0 0
        %1206 = vmatprep.subr.bf16.mxu0 0
        %1207 = vmatpush1.bf16.msra.mxu0 0
        %1208 = vmatprep.subr.bf16.mxu0 0
        %1209 = vmatpush1.bf16.msra.mxu0 0
        %1210 = vmatprep.subr.bf16.mxu0 0
        %1211 = vmatpush1.bf16.msra.mxu0 0
        %1212 = vmatprep.subr.bf16.mxu0 0
        %1213 = vmatpush1.bf16.msra.mxu0 0
        %1214 = vmatprep.mubr.bf16.mxu0 0
        %1215 = vmatmul.mubr.bf16.gmra.mrb[0].mxu0 %v1177
        %v1216 = vpop.f32.mrb[0].mxu0
        %v1217 = vadd.f32 0.0, %v1216
        %v1218 = vpop.f32.mrb[0].mxu0
        %v1219 = vpop.f32.mrb[0].mxu0
        %v1220 = vpop.f32.mrb[0].mxu0
        %1221 = vdwg.mxu0
        %v1222 = vadd.f32 %v1063, %v1217
        %v1223 = vld [vmem:[#allocation5] sm:$0x1]
        %v1225 = vlaneseq
        %v1226 = vshrl.u32 %v1225, 7
        %v1227 = vsub.s32 0, %v1226
        %v1228 = vrot.slane %v1223, %v1227
        %v1230 = vadd.f32 %v1222, %v1228
        %v1231 = vadd.f32 %v1230, %v488
        %v1232 = vld [vmem:[#allocation7] sm:$0x1]
        %v1233 = vld [vmem:[#allocation8] sm:$0x1]
        %v1234 = vsel %vm491, %v1231, 0.0
        %1235 = vadd.xlane.f32.xlu0 %v1234
        %v1236 = vpop.xlane.xlu0 %1235
        %v1237 = vmul.f32 %v1236, %v495
        %v1238 = vsub.f32 %v1231, %v1237
        %v1239 = vmul.f32 %v1238, %v1238
        %v1240 = vsel %vm491, %v1239, 0.0
        %1241 = vadd.xlane.f32.xlu0 %v1240
        %v1242 = vpop.xlane.xlu0 %1241
        %v1243 = vmul.f32 %v1242, %v495
        %v1244 = vadd.f32 %v1243, 1e-05
        %v1245 = vrsqrt.pop %v1244
        %v1246 = vmul.f32 %v1238, %v1245
        %v1248 = vlaneseq
        %v1249 = vshrl.u32 %v1248, 7
        %v1250 = vsub.s32 0, %v1249
        %v1251 = vrot.slane %v1232, %v1250
        %v1253 = vmul.f32 %v1246, %v1251
        %v1255 = vlaneseq
        %v1256 = vshrl.u32 %v1255, 7
        %v1257 = vsub.s32 0, %v1256
        %v1258 = vrot.slane %v1233, %v1257
        %v1260 = vadd.f32 %v1253, %v1258
        %v1261 = vpack.c.bf16 %v1260, %v1260
        %v1262 = vld [vmem:[%s9] sm:$0xf]
        %v1263 = vld [vmem:[%s9 + $0x4] sm:$0xf]
        %v1264 = vld [vmem:[%s9 + $0x8] sm:$0xf]
        %v1265 = vld [vmem:[%s9 + $0xc] sm:$0xf]
        %v1266 = vld [vmem:[%s10] sm:$0x1]
        %v1268 = vlaneseq
        %v1269 = vshrl.u32 %v1268, 7
        %v1270 = vsub.s32 0, %v1269
        %v1271 = vrot.slane %v1266, %v1270
        %v1277 = vunpack.c.l.b16 %v1262
        %v1278 = vunpack.c.l.b16 %v1263
        %v1279 = vunpack.c.l.b16 %v1264
        %v1280 = vunpack.c.l.b16 %v1265
        %v1281 = vpack.c.b16 %v1278, %v1277
        %v1282 = vpack.c.b16 %v1280, %v1279
        %v1286 = vsel %vm491, %v1261, 0
        %1288 = vmatprep.subr.bf16.mxu0 0
        %1289 = vmatpush1.bf16.msra.mxu0 %v1281
        %1290 = vmatprep.subr.bf16.mxu0 0
        %1291 = vmatpush1.bf16.msra.mxu0 %v1282
        %1292 = vmatprep.subr.bf16.mxu0 0
        %1293 = vmatpush1.bf16.msra.mxu0 0
        %1294 = vmatprep.subr.bf16.mxu0 0
        %1295 = vmatpush1.bf16.msra.mxu0 0
        %1296 = vmatprep.subr.bf16.mxu0 0
        %1297 = vmatpush1.bf16.msra.mxu0 0
        %1298 = vmatprep.subr.bf16.mxu0 0
        %1299 = vmatpush1.bf16.msra.mxu0 0
        %1300 = vmatprep.subr.bf16.mxu0 0
        %1301 = vmatpush1.bf16.msra.mxu0 0
        %1302 = vmatprep.subr.bf16.mxu0 0
        %1303 = vmatpush1.bf16.msra.mxu0 0
        %1304 = vmatprep.subr.bf16.mxu0 0
        %1305 = vmatpush1.bf16.msra.mxu0 0
        %1306 = vmatprep.subr.bf16.mxu0 0
        %1307 = vmatpush1.bf16.msra.mxu0 0
        %1308 = vmatprep.subr.bf16.mxu0 0
        %1309 = vmatpush1.bf16.msra.mxu0 0
        %1310 = vmatprep.subr.bf16.mxu0 0
        %1311 = vmatpush1.bf16.msra.mxu0 0
        %1312 = vmatprep.subr.bf16.mxu0 0
        %1313 = vmatpush1.bf16.msra.mxu0 0
        %1314 = vmatprep.subr.bf16.mxu0 0
        %1315 = vmatpush1.bf16.msra.mxu0 0
        %1316 = vmatprep.subr.bf16.mxu0 0
        %1317 = vmatpush1.bf16.msra.mxu0 0
        %1318 = vmatprep.subr.bf16.mxu0 0
        %1319 = vmatpush1.bf16.msra.mxu0 0
        %1320 = vmatprep.mubr.bf16.mxu0 0
        %1321 = vmatmul.mubr.bf16.gmra.mrb[0].mxu0 %v1286
        %v1322 = vpop.f32.mrb[0].mxu0
        %v1323 = vadd.f32 %v1271, %v1322
        %v1324 = vpop.f32.mrb[0].mxu0
        %v1325 = vpop.f32.mrb[0].mxu0
        %v1326 = vpop.f32.mrb[0].mxu0
        %1327 = vdwg.mxu0
        %v1328 = vmul.f32 %v1323, 0.5
        %v1329 = vmul.f32 %v1323, 0.044715
        %v1330 = vmul.f32 %v1329, %v1323
        %v1331 = vmul.f32 %v1330, %v1323
        %v1332 = vadd.f32 %v1323, %v1331
        %v1333 = vmul.f32 %v1332, 0.7978846
        %v1334 = vtanh.pop %v1333
        %v1335 = vadd.f32 %v1334, 1.0
        %v1336 = vmul.f32 %v1328, %v1335
        %v1337 = vpack.c.bf16 %v1336, %v1336
        %v1338 = vld [vmem:[%s11] sm:$0xf]
        %v1339 = vld [vmem:[%s11 + $0x4] sm:$0xf]
        %v1340 = vld [vmem:[%s11 + $0x8] sm:$0xf]
        %v1341 = vld [vmem:[%s11 + $0xc] sm:$0xf]
        %v1342 = vld [vmem:[%s11 + $0x10] sm:$0xf]
        %v1343 = vld [vmem:[%s11 + $0x14] sm:$0xf]
        %v1344 = vld [vmem:[%s11 + $0x18] sm:$0xf]
        %v1345 = vld [vmem:[%s11 + $0x1c] sm:$0xf]
        %v1346 = vld [vmem:[%s12] sm:$0x1]
        %v1348 = vlaneseq
        %v1349 = vshrl.u32 %v1348, 7
        %v1350 = vsub.s32 0, %v1349
        %v1351 = vrot.slane %v1346, %v1350
        %v1361 = vunpack.c.l.b16 %v1338
        %v1362 = vunpack.c.l.b16 %v1339
        %v1363 = vunpack.c.l.b16 %v1340
        %v1364 = vunpack.c.l.b16 %v1341
        %v1365 = vunpack.c.l.b16 %v1342
        %v1366 = vunpack.c.l.b16 %v1343
        %v1367 = vunpack.c.l.b16 %v1344
        %v1368 = vunpack.c.l.b16 %v1345
        %v1369 = vpack.c.b16 %v1362, %v1361
        %v1370 = vpack.c.b16 %v1364, %v1363
        %v1371 = vpack.c.b16 %v1366, %v1365
        %v1372 = vpack.c.b16 %v1368, %v1367
        %vm1377 = vcmask 523264
        %v1379 = vsel %vm1377, %v1337, 0
        %1381 = vmatprep.subr.bf16.mxu0 0
        %1382 = vmatpush1.bf16.msra.mxu0 %v1369
        %1383 = vmatprep.subr.bf16.mxu0 0
        %1384 = vmatpush1.bf16.msra.mxu0 %v1370
        %1385 = vmatprep.subr.bf16.mxu0 0
        %1386 = vmatpush1.bf16.msra.mxu0 %v1371
        %1387 = vmatprep.subr.bf16.mxu0 0
        %1388 = vmatpush1.bf16.msra.mxu0 %v1372
        %1389 = vmatprep.subr.bf16.mxu0 0
        %1390 = vmatpush1.bf16.msra.mxu0 0
        %1391 = vmatprep.subr.bf16.mxu0 0
        %1392 = vmatpush1.bf16.msra.mxu0 0
        %1393 = vmatprep.subr.bf16.mxu0 0
        %1394 = vmatpush1.bf16.msra.mxu0 0
        %1395 = vmatprep.subr.bf16.mxu0 0
        %1396 = vmatpush1.bf16.msra.mxu0 0
        %1397 = vmatprep.subr.bf16.mxu0 0
        %1398 = vmatpush1.bf16.msra.mxu0 0
        %1399 = vmatprep.subr.bf16.mxu0 0
        %1400 = vmatpush1.bf16.msra.mxu0 0
        %1401 = vmatprep.subr.bf16.mxu0 0
        %1402 = vmatpush1.bf16.msra.mxu0 0
        %1403 = vmatprep.subr.bf16.mxu0 0
        %1404 = vmatpush1.bf16.msra.mxu0 0
        %1405 = vmatprep.subr.bf16.mxu0 0
        %1406 = vmatpush1.bf16.msra.mxu0 0
        %1407 = vmatprep.subr.bf16.mxu0 0
        %1408 = vmatpush1.bf16.msra.mxu0 0
        %1409 = vmatprep.subr.bf16.mxu0 0
        %1410 = vmatpush1.bf16.msra.mxu0 0
        %1411 = vmatprep.subr.bf16.mxu0 0
        %1412 = vmatpush1.bf16.msra.mxu0 0
        %1413 = vmatprep.mubr.bf16.mxu0 0
        %1414 = vmatmul.mubr.bf16.gmra.mrb[0].mxu0 %v1379
        %v1415 = vpop.f32.mrb[0].mxu0
        %v1416 = vadd.f32 %v1351, %v1415
        %v1417 = vpop.f32.mrb[0].mxu0
        %v1418 = vpop.f32.mrb[0].mxu0
        %v1419 = vpop.f32.mrb[0].mxu0
        %1420 = vdwg.mxu0
        %v1421 = vadd.f32 %v1416, %v1231
        %1422 = vst.msk [vmem:[%s482] sm:$0xff] %vm491, %v1421
        %s1423 = sand.u32 %s316, 1
        %s1424 = scalar_lea.sflag [#allocation4], %s1423
        %s1425 = sand.u32 %s316, 1
        %s1426 = smul.addr %s1425, 8
        %s1427 = scalar_lea.vmem [#allocation10], %s1426
        // Predicated region
        $region89: #{tpu_custom_call.1} parent=71 // pred_check
          %p1428 = pneg %p326
        $region90: #{tpu_custom_call.1} parent=71 // pred_check_branch
          %1430 = sbr.rel (%p1428) target = $region92
        $region91: #{tpu_custom_call.1} parent=71 // pred_region
          %s1432 = ssub.s32 128, 128
          %1433 = vsyncadd %s1424, %s1432
          %s1434 = smul.addr %s30, 128
          %s1435 = scalar_lea.hbm %s13, %s1434
          %s1437 = sshll.u32 %s1427, 4
          %s1438 = int_to_ptr.vmem [resolvable:$true] %s1437
          %1440 = dma.vmem_to_hbm [thread:$0]  %s1438, 128, %s1435, %s1424
        $region92: #{tpu_custom_call.1} parent=71 // pred_fallthru
          _
      $region72: #{tpu_custom_call.1} parent=5 // pred_fallthru
        _
      %p1441 = scmp.le.s32.totalorder 2, %s25
      // Predicated region
      $region93: #{tpu_custom_call.1} parent=5 // pred_check
        %p1442 = pneg %p1441
      $region94: #{tpu_custom_call.1} parent=5 // pred_check_branch
        %1444 = sbr.rel (%p1442) target = $region96
      $region95: #{tpu_custom_call.1} parent=5 // pred_region
        %s1445 = ssub.s32 %s25, 2
        // Predicated region
        $region97: #{tpu_custom_call.1} parent=95 // pred_check
          %p1446 = pneg %p332
        $region98: #{tpu_custom_call.1} parent=95 // pred_check_branch
          %1448 = sbr.rel (%p1446) target = $region100
        $region99: #{tpu_custom_call.1} parent=95 // pred_region
          %s1449 = sand.u32 %s317, 1
          %s1450 = scalar_lea.sflag [#allocation4], %s1449
          %s1451 = sand.u32 %s317, 1
          %s1452 = smul.addr %s1451, 8
          %s1453 = scalar_lea.vmem [#allocation10], %s1452
          %1454 = dma.done %s1450, 128
        $region100: #{tpu_custom_call.1} parent=95 // pred_fallthru
          _
      $region96: #{tpu_custom_call.1} parent=5 // pred_fallthru
        _
    $region6: #{tpu_custom_call.1} parent=1 // loop_footer
      %s29 = sadd.s32 1, %s25
    $region7: #{tpu_custom_call.1} parent=1 // loop_footer_branch
      %24 = sbr.rel target = $region3
    $region8: #{tpu_custom_call.1} parent=1 // loop_exit
      _
    %1455 = vsyncpa [#allocation3], 1
    %s1456 = scalar_lea.sflag [#allocation3], 1
    %1457 = vsyncpa %s1456, 1
    %1458 = vsyncpa [#allocation6], 1
    %1459 = vsyncpa [#allocation9], 1
    %1460 = vsyncpa [#allocation4], 1
    %s1461 = scalar_lea.sflag [#allocation4], 1
    %1462 = vsyncpa %s1461, 1

</llo_original>
